<compile_context>
chip_gen: v7x
topology: tpu7x:2x2x1
jax: 0.10.0
libtpu: 0.0.40
codegen_flags: <defaults>
</compile_context>

<pallas_src>
import math

import jax
import jax.numpy as jnp
from jax.experimental import pallas as pl
from jax.experimental.pallas import tpu as pltpu


def make_mha_kernel(n_heads, dim_head, bt, lq, lv, mxu_dtype, approx_recip):
    scale = 1.0 / math.sqrt(dim_head)
    d_out = n_heads * dim_head

    def kernel(q_in, v_in, mask_ref, wq, bq, wk, bk, wv, bv, wo, bo, out_ref):
        # ---- fused input projections: tall (Bt*L, D_in) @ (D_in, D_out) ----
        qf = q_in[...].astype(mxu_dtype)          # (Bt*Lq, D_in)
        vf = v_in[...].astype(mxu_dtype)          # (Bt*Lv, D_in)

        # 1/sqrt(dim_head) folded into q once (f32), not per score tile
        q2 = (jnp.dot(qf, wq[...], preferred_element_type=jnp.float32)
              + bq[...]) * scale
        k2 = jnp.dot(vf, wk[...], preferred_element_type=jnp.float32) + bk[...]
        v2 = jnp.dot(vf, wv[...], preferred_element_type=jnp.float32) + bv[...]

        q3 = q2.reshape(bt, lq, d_out)
        k3 = k2.reshape(bt, lv, d_out)
        v3 = v2.reshape(bt, lv, d_out)

        # additive mask bias, hoisted out of the head loop; finite -1e30 so a
        # fully-masked row yields a uniform softmax instead of NaN.
        bias = jnp.where(mask_ref[...] == 0,
                         jnp.float32(-1e30), jnp.float32(0.0))   # (Bt, 1, Lv)

        acc = jnp.zeros((bt * lq, d_out), jnp.float32)
        for h in range(n_heads):
            lo = h * dim_head
            qh = q3[:, :, lo:lo + dim_head].astype(mxu_dtype)    # (Bt, Lq, Dh)
            kh = k3[:, :, lo:lo + dim_head].astype(mxu_dtype)    # (Bt, Lv, Dh)
            vh = v3[:, :, lo:lo + dim_head].astype(mxu_dtype)    # (Bt, Lv, Dh)

            # batched scores, no explicit transpose: (Bt, Lq, Lv), f32 acc
            s = jnp.einsum("bqd,bkd->bqk", qh, kh,
                           preferred_element_type=jnp.float32) + bias

            # f32 softmax along value_len
            s_max = jnp.max(s, axis=-1, keepdims=True)
            p = jnp.exp(s - s_max)
            denom = jnp.sum(p, axis=-1, keepdims=True)
            p = p * pl.reciprocal(denom, approx=approx_recip)
            # (dropout on attention weights = identity in eval mode)

            ctx = jnp.einsum("bqk,bkd->bqd", p.astype(mxu_dtype), vh,
                             preferred_element_type=jnp.float32)  # (Bt, Lq, Dh)

            # per-head partial output projection, accumulated in registers:
            # no VMEM scratch round-trip, no Dh-wide masked scatter stores.
            wo_h = wo[pl.ds(lo, dim_head), :]                     # (Dh, D_out)
            acc = acc + jnp.dot(
                ctx.reshape(bt * lq, dim_head).astype(mxu_dtype), wo_h,
                preferred_element_type=jnp.float32)

        out_ref[...] = (acc + bo[...]).reshape(out_ref.shape)

    return kernel


def _pick_batch_tile(B, Lq, Lv, rows_target=256):
    """Batch-tile size: sublane-aligned row counts, >= 2 grid steps whenever
    possible (v7x has 2 TensorCores), and Bt*Lq grown toward rows_target so
    the MXU M dimension fills up for large batches."""
    aligned = [d for d in range(1, B + 1)
               if B % d == 0 and (d * Lq) % 8 == 0 and (d * Lv) % 8 == 0]
    if not aligned:
        return B                      # full-array block is always legal
    multi_step = [d for d in aligned if B // d >= 2] or aligned
    full_mxu = [d for d in multi_step if d * Lq >= rows_target]
    return min(full_mxu) if full_mxu else max(multi_step)


def _vmem_limit_bytes(Bt, Lq, Lv, D_in, D_out, mxu_itemsize):
    """Derive the scoped-VMEM limit from actual usage (vs. a blanket 48 MiB),
    keeping headroom on v7x's 64 MiB parts."""
    weights = mxu_itemsize * (3 * D_in * D_out + D_out * D_out)
    biases = 4 * 4 * D_out
    # double-buffered per-step I/O tiles (f32 activations + int32 mask)
    io_tiles = 2 * 4 * (Bt * Lq * D_in + Bt * Lv * D_in + Bt * Lv
                        + Bt * Lq * D_out)
    # in-kernel f32 live values: q/k/v projections, score tile, accumulator
    live = 4 * Bt * (3 * max(Lq, Lv) * D_out + Lq * Lv + Lq * D_out)
    est = weights + biases + io_tiles + live
    return int(min(max(2 * est, 8 << 20), 32 << 20))


def multi_head_attention(query, value, mask, params, n_heads,
                         mxu_dtype=jnp.bfloat16, approx_recip=True):
    """query (B, Lq, D_in), value (B, Lv, D_in), mask (B, Lv) -> (B, Lq, D_out)."""
    B, Lq, D_in = query.shape
    _, Lv, _ = value.shape
    wq, bq, wk, bk, wv, bv, wo, bo = params
    D_out = wq.shape[1]
    if D_out % n_heads != 0:
        raise ValueError("dim_out must be a multiple of n_heads")
    dim_head = D_out // n_heads

    Bt = _pick_batch_tile(B, Lq, Lv)
    grid = (B // Bt,)

    # lane-dense 2-D slabs; all reshapes here are free wrapper-side plumbing
    qf = query.reshape(B * Lq, D_in).astype(jnp.float32)
    vf = value.reshape(B * Lv, D_in).astype(jnp.float32)
    mask3 = mask.astype(jnp.int32).reshape(B, 1, Lv)

    # MXU-operand weights cast once in the wrapper; biases stay f32
    wq_c, wk_c, wv_c, wo_c = (w.astype(mxu_dtype) for w in (wq, wk, wv, wo))
    bq2, bk2, bv2, bo2 = (b.astype(jnp.float32).reshape(1, D_out)
                          for b in (bq, bk, bv, bo))

    kernel = make_mha_kernel(n_heads, dim_head, Bt, Lq, Lv,
                             mxu_dtype, approx_recip)

    # Weights / biases: whole-array, resident in VMEM (not double-buffered).
    def resident():
        return pl.BlockSpec(memory_space=pltpu.MemorySpace.VMEM)

    out_flat = pl.pallas_call(
        kernel,
        out_shape=jax.ShapeDtypeStruct((B * Lq, D_out), jnp.float32),
        grid_spec=pltpu.PrefetchScalarGridSpec(
            num_scalar_prefetch=0,
            grid=grid,
            in_specs=[
                pl.BlockSpec((Bt * Lq, D_in), lambda i: (i, 0)),   # query tile
                pl.BlockSpec((Bt * Lv, D_in), lambda i: (i, 0)),   # value tile
                pl.BlockSpec((Bt, 1, Lv), lambda i: (i, 0, 0)),    # mask tile
                resident(), resident(),      # Wq, bq
                resident(), resident(),      # Wk, bk
                resident(), resident(),      # Wv, bv
                resident(), resident(),      # Wo, bo
            ],
            out_specs=pl.BlockSpec((Bt * Lq, D_out), lambda i: (i, 0)),
        ),
        compiler_params=pltpu.CompilerParams(
            dimension_semantics=("parallel",),
            vmem_limit_bytes=_vmem_limit_bytes(
                Bt, Lq, Lv, D_in, D_out, jnp.dtype(mxu_dtype).itemsize),
        ),
    )(qf, vf, mask3, wq_c, bq2, wk_c, bk2, wv_c, bv2, wo_c, bo2)

    return out_flat.reshape(B, Lq, D_out)


def init_params(key, dim_in, dim_out):
    """Deterministic nn.Linear-style init. Weights stored as (in, out)."""
    keys = jax.random.split(key, 8)

    def linear(kw, kb, fan_in, fan_out):
        bound = 1.0 / math.sqrt(fan_in)
        w = jax.random.uniform(kw, (fan_in, fan_out), jnp.float32, -bound, bound)
        b = jax.random.uniform(kb, (fan_out,), jnp.float32, -bound, bound)
        return w, b

    wq, bq = linear(keys[0], keys[1], dim_in, dim_out)
    wk, bk = linear(keys[2], keys[3], dim_in, dim_out)
    wv, bv = linear(keys[4], keys[5], dim_in, dim_out)
    wo, bo = linear(keys[6], keys[7], dim_out, dim_out)
    return (wq, bq, wk, bk, wv, bv, wo, bo)


def reference_mha(query, value, mask, params, n_heads):
    """Plain-JAX reference (mirrors the PyTorch forward, dropout in eval)."""
    wq, bq, wk, bk, wv, bv, wo, bo = params
    B, Lq, _ = query.shape
    _, Lv, _ = value.shape
    D_out = wq.shape[1]
    dh = D_out // n_heads
    q = query @ wq + bq
    k = value @ wk + bk
    v = value @ wv + bv

    def split(x, L):
        return x.reshape(B, L, n_heads, dh).transpose(0, 2, 1, 3)

    qh, kh, vh = split(q, Lq), split(k, Lv), split(v, Lv)
    score = jnp.einsum("bhqd,bhkd->bhqk", qh, kh) / math.sqrt(dh)
    score = jnp.where(mask.reshape(B, 1, 1, Lv) == 0, -jnp.inf, score)
    w = jax.nn.softmax(score, axis=-1)
    attn = jnp.einsum("bhqk,bhkd->bhqd", w, vh)
    attn = attn.transpose(0, 2, 1, 3).reshape(B, Lq, D_out)
    return attn @ wo + bo


if __name__ == "__main__":
    B, Lq, Lv = 2, 8, 8
    dim_in, dim_out, n_heads = 32, 32, 4

    key = jax.random.PRNGKey(0)
    k_q, k_v, k_m, k_p = jax.random.split(key, 4)

    query = jax.random.normal(k_q, (B, Lq, dim_in), jnp.float32)
    value = jax.random.normal(k_v, (B, Lv, dim_in), jnp.float32)
    # mask: 1 = attend, 0 = masked; ensure at least the first half is attended
    mask = (jax.random.uniform(k_m, (B, Lv)) > 0.3).astype(jnp.int32)
    mask = mask.at[:, : Lv // 2].set(1)

    params = init_params(k_p, dim_in, dim_out)
    ref = reference_mha(query, value, mask, params, n_heads)

    # exact path: f32 MXU operands + exact reciprocal -> tight tolerance
    out_f32 = multi_head_attention(query, value, mask, params, n_heads,
                                   mxu_dtype=jnp.float32, approx_recip=False)
    out_f32 = jax.block_until_ready(out_f32)
    assert out_f32.shape == (B, Lq, dim_out)
    assert jnp.allclose(out_f32, ref, atol=1e-4, rtol=1e-4), "f32 mismatch"

    # performance path: bf16 MXU operands (f32 accumulate / f32 softmax) +
    # approx EUP reciprocal -> loosened tolerance vs the f32 reference
    out_bf16 = multi_head_attention(query, value, mask, params, n_heads,
                                    mxu_dtype=jnp.bfloat16, approx_recip=True)
    out_bf16 = jax.block_until_ready(out_bf16)
    assert out_bf16.shape == (B, Lq, dim_out)
    assert jnp.allclose(out_bf16, ref, atol=5e-2, rtol=5e-2), "bf16 mismatch"

    print("KERNEL_OK")
</pallas_src>

<mosaic_0001>
module attributes {stable_mosaic.version = 11 : i64} {
  func.func @kernel(%arg0: i32, %arg1: memref<8x32xf32, #tpu.memory_space<vmem>>, %arg2: memref<8x32xf32, #tpu.memory_space<vmem>>, %arg3: memref<1x1x8xi32, #tpu.memory_space<vmem>>, %arg4: memref<32x32xf32, #tpu.memory_space<vmem>>, %arg5: memref<1x32xf32, #tpu.memory_space<vmem>>, %arg6: memref<32x32xf32, #tpu.memory_space<vmem>>, %arg7: memref<1x32xf32, #tpu.memory_space<vmem>>, %arg8: memref<32x32xf32, #tpu.memory_space<vmem>>, %arg9: memref<1x32xf32, #tpu.memory_space<vmem>>, %arg10: memref<32x32xf32, #tpu.memory_space<vmem>>, %arg11: memref<1x32xf32, #tpu.memory_space<vmem>>, %arg12: memref<8x32xf32, #tpu.memory_space<vmem>>) attributes {dimension_semantics = [#tpu.dimension_semantics<parallel>], iteration_bounds = array<i64: 2>, scalar_prefetch = 0 : i64, scratch_operands = 0 : i64, tpu.core_type = #tpu.core_type<tc>, window_params = [{transform_indices = @transform_0, window_bounds = array<i64: 8, 32>}, {transform_indices = @transform_1, window_bounds = array<i64: 8, 32>}, {transform_indices = @transform_2, window_bounds = array<i64: 1, 1, 8>}, {pipeline_mode = #tpu.pipeline_mode<synchronous>, transform_indices = @transform_3, window_bounds = array<i64: 32, 32>}, {pipeline_mode = #tpu.pipeline_mode<synchronous>, transform_indices = @transform_4, window_bounds = array<i64: 1, 32>}, {pipeline_mode = #tpu.pipeline_mode<synchronous>, transform_indices = @transform_5, window_bounds = array<i64: 32, 32>}, {pipeline_mode = #tpu.pipeline_mode<synchronous>, transform_indices = @transform_6, window_bounds = array<i64: 1, 32>}, {pipeline_mode = #tpu.pipeline_mode<synchronous>, transform_indices = @transform_7, window_bounds = array<i64: 32, 32>}, {pipeline_mode = #tpu.pipeline_mode<synchronous>, transform_indices = @transform_8, window_bounds = array<i64: 1, 32>}, {pipeline_mode = #tpu.pipeline_mode<synchronous>, transform_indices = @transform_9, window_bounds = array<i64: 32, 32>}, {pipeline_mode = #tpu.pipeline_mode<synchronous>, transform_indices = @transform_10, window_bounds = array<i64: 1, 32>}, {transform_indices = @transform_11, window_bounds = array<i64: 8, 32>}]} {
    %c0 = arith.constant 0 : index
    %c0_0 = arith.constant 0 : index
    %0 = vector.load %arg1[%c0, %c0_0] : memref<8x32xf32, #tpu.memory_space<vmem>>, vector<8x32xf32>
    %c0_1 = arith.constant 0 : index
    %c0_2 = arith.constant 0 : index
    %1 = vector.load %arg2[%c0_1, %c0_2] : memref<8x32xf32, #tpu.memory_space<vmem>>, vector<8x32xf32>
    %c0_3 = arith.constant 0 : index
    %c0_4 = arith.constant 0 : index
    %2 = vector.load %arg4[%c0_3, %c0_4] : memref<32x32xf32, #tpu.memory_space<vmem>>, vector<32x32xf32>
    %cst = arith.constant dense<0.000000e+00> : vector<8x32xf32>
    %3 = tpu.matmul %0, %2, %cst {dimension_numbers = #tpu.dot_dimension_numbers<[1], [0], [0], [1], [0, 0, 1, 1], [], []>} : vector<8x32xf32>, vector<32x32xf32>, vector<8x32xf32> -> vector<8x32xf32>
    %c0_5 = arith.constant 0 : index
    %c0_6 = arith.constant 0 : index
    %4 = vector.load %arg5[%c0_5, %c0_6] : memref<1x32xf32, #tpu.memory_space<vmem>>, vector<1x32xf32>
    %5 = vector.broadcast %4 : vector<1x32xf32> to vector<8x32xf32>
    %6 = arith.addf %3, %5 : vector<8x32xf32>
    %cst_7 = arith.constant 0.353553385 : f32
    %7 = vector.broadcast %cst_7 : f32 to vector<8x32xf32>
    %8 = arith.mulf %6, %7 : vector<8x32xf32>
    %c0_8 = arith.constant 0 : index
    %c0_9 = arith.constant 0 : index
    %9 = vector.load %arg6[%c0_8, %c0_9] : memref<32x32xf32, #tpu.memory_space<vmem>>, vector<32x32xf32>
    %cst_10 = arith.constant dense<0.000000e+00> : vector<8x32xf32>
    %10 = tpu.matmul %1, %9, %cst_10 {dimension_numbers = #tpu.dot_dimension_numbers<[1], [0], [0], [1], [0, 0, 1, 1], [], []>} : vector<8x32xf32>, vector<32x32xf32>, vector<8x32xf32> -> vector<8x32xf32>
    %c0_11 = arith.constant 0 : index
    %c0_12 = arith.constant 0 : index
    %11 = vector.load %arg7[%c0_11, %c0_12] : memref<1x32xf32, #tpu.memory_space<vmem>>, vector<1x32xf32>
    %12 = vector.broadcast %11 : vector<1x32xf32> to vector<8x32xf32>
    %13 = arith.addf %10, %12 : vector<8x32xf32>
    %c0_13 = arith.constant 0 : index
    %c0_14 = arith.constant 0 : index
    %14 = vector.load %arg8[%c0_13, %c0_14] : memref<32x32xf32, #tpu.memory_space<vmem>>, vector<32x32xf32>
    %cst_15 = arith.constant dense<0.000000e+00> : vector<8x32xf32>
    %15 = tpu.matmul %1, %14, %cst_15 {dimension_numbers = #tpu.dot_dimension_numbers<[1], [0], [0], [1], [0, 0, 1, 1], [], []>} : vector<8x32xf32>, vector<32x32xf32>, vector<8x32xf32> -> vector<8x32xf32>
    %c0_16 = arith.constant 0 : index
    %c0_17 = arith.constant 0 : index
    %16 = vector.load %arg9[%c0_16, %c0_17] : memref<1x32xf32, #tpu.memory_space<vmem>>, vector<1x32xf32>
    %17 = vector.broadcast %16 : vector<1x32xf32> to vector<8x32xf32>
    %18 = arith.addf %15, %17 : vector<8x32xf32>
    %19 = vector.shape_cast %8 : vector<8x32xf32> to vector<1x8x32xf32>
    %20 = vector.shape_cast %13 : vector<8x32xf32> to vector<1x8x32xf32>
    %21 = vector.shape_cast %18 : vector<8x32xf32> to vector<1x8x32xf32>
    %c0_18 = arith.constant 0 : index
    %c0_19 = arith.constant 0 : index
    %c0_20 = arith.constant 0 : index
    %22 = vector.load %arg3[%c0_18, %c0_19, %c0_20] : memref<1x1x8xi32, #tpu.memory_space<vmem>>, vector<1x1x8xi32>
    %c0_i32 = arith.constant 0 : i32
    %23 = vector.broadcast %c0_i32 : i32 to vector<1x1x8xi32>
    %24 = arith.cmpi eq, %22, %23 : vector<1x1x8xi32>
    %cst_21 = arith.constant -1.000000e+30 : f32
    %cst_22 = arith.constant 0.000000e+00 : f32
    %25 = vector.broadcast %cst_21 : f32 to vector<1x1x8xf32>
    %26 = vector.broadcast %cst_22 : f32 to vector<1x1x8xf32>
    %27 = arith.select %24, %25, %26 : vector<1x1x8xi1>, vector<1x1x8xf32>
    %cst_23 = arith.constant 0.000000e+00 : f32
    %28 = vector.broadcast %cst_23 : f32 to vector<8x32xf32>
    %29 = vector.extract_strided_slice %19 {offsets = [0, 0, 0], sizes = [1, 8, 8], strides = [1, 1, 1]} : vector<1x8x32xf32> to vector<1x8x8xf32>
    %30 = vector.extract_strided_slice %20 {offsets = [0, 0, 0], sizes = [1, 8, 8], strides = [1, 1, 1]} : vector<1x8x32xf32> to vector<1x8x8xf32>
    %31 = vector.extract_strided_slice %21 {offsets = [0, 0, 0], sizes = [1, 8, 8], strides = [1, 1, 1]} : vector<1x8x32xf32> to vector<1x8x8xf32>
    "tpu.trace_start"() <{level = 10 : i32, message = "bqd,bkd->bqk"}> : () -> ()
    %cst_24 = arith.constant dense<0.000000e+00> : vector<1x8x8xf32>
    %32 = tpu.matmul %29, %30, %cst_24 {dimension_numbers = #tpu.dot_dimension_numbers<[2], [2], [1], [1], [0, 0, 0, 1, 1, 1], [0], [0]>} : vector<1x8x8xf32>, vector<1x8x8xf32>, vector<1x8x8xf32> -> vector<1x8x8xf32>
    "tpu.trace_stop"() : () -> ()
    %33 = vector.broadcast %27 : vector<1x1x8xf32> to vector<1x8x8xf32>
    %34 = arith.addf %32, %33 : vector<1x8x8xf32>
    %cst_25 = arith.constant dense<0xFF800000> : vector<1x8xf32>
    %35 = vector.multi_reduction <maximumf>, %34, %cst_25 [2] : vector<1x8x8xf32> to vector<1x8xf32>
    %36 = vector.shape_cast %35 : vector<1x8xf32> to vector<1x8x1xf32>
    %37 = vector.broadcast %36 : vector<1x8x1xf32> to vector<1x8x8xf32>
    %38 = arith.subf %34, %37 : vector<1x8x8xf32>
    %39 = math.exp %38 : vector<1x8x8xf32>
    %cst_26 = arith.constant dense<0.000000e+00> : vector<1x8xf32>
    %40 = vector.multi_reduction <add>, %39, %cst_26 [2] : vector<1x8x8xf32> to vector<1x8xf32>
    %41 = vector.shape_cast %40 : vector<1x8xf32> to vector<1x8x1xf32>
    %42 = tpu.reciprocal %41 : vector<1x8x1xf32> -> vector<1x8x1xf32>
    %43 = vector.broadcast %42 : vector<1x8x1xf32> to vector<1x8x8xf32>
    %44 = arith.mulf %39, %43 : vector<1x8x8xf32>
    "tpu.trace_start"() <{level = 10 : i32, message = "bqk,bkd->bqd"}> : () -> ()
    %cst_27 = arith.constant dense<0.000000e+00> : vector<1x8x8xf32>
    %45 = tpu.matmul %44, %31, %cst_27 {dimension_numbers = #tpu.dot_dimension_numbers<[2], [1], [1], [2], [0, 0, 0, 1, 1, 2], [0], [0]>} : vector<1x8x8xf32>, vector<1x8x8xf32>, vector<1x8x8xf32> -> vector<1x8x8xf32>
    "tpu.trace_stop"() : () -> ()
    %c0_28 = arith.constant 0 : index
    %c0_29 = arith.constant 0 : index
    %46 = vector.load %arg10[%c0_28, %c0_29] : memref<32x32xf32, #tpu.memory_space<vmem>>, vector<8x32xf32>
    %47 = vector.shape_cast %45 : vector<1x8x8xf32> to vector<8x8xf32>
    %cst_30 = arith.constant dense<0.000000e+00> : vector<8x32xf32>
    %48 = tpu.matmul %47, %46, %cst_30 {dimension_numbers = #tpu.dot_dimension_numbers<[1], [0], [0], [1], [0, 0, 1, 1], [], []>} : vector<8x8xf32>, vector<8x32xf32>, vector<8x32xf32> -> vector<8x32xf32>
    %49 = arith.addf %28, %48 : vector<8x32xf32>
    %50 = vector.extract_strided_slice %19 {offsets = [0, 0, 8], sizes = [1, 8, 8], strides = [1, 1, 1]} : vector<1x8x32xf32> to vector<1x8x8xf32>
    %51 = vector.extract_strided_slice %20 {offsets = [0, 0, 8], sizes = [1, 8, 8], strides = [1, 1, 1]} : vector<1x8x32xf32> to vector<1x8x8xf32>
    %52 = vector.extract_strided_slice %21 {offsets = [0, 0, 8], sizes = [1, 8, 8], strides = [1, 1, 1]} : vector<1x8x32xf32> to vector<1x8x8xf32>
    "tpu.trace_start"() <{level = 10 : i32, message = "bqd,bkd->bqk"}> : () -> ()
    %cst_31 = arith.constant dense<0.000000e+00> : vector<1x8x8xf32>
    %53 = tpu.matmul %50, %51, %cst_31 {dimension_numbers = #tpu.dot_dimension_numbers<[2], [2], [1], [1], [0, 0, 0, 1, 1, 1], [0], [0]>} : vector<1x8x8xf32>, vector<1x8x8xf32>, vector<1x8x8xf32> -> vector<1x8x8xf32>
    "tpu.trace_stop"() : () -> ()
    %54 = vector.broadcast %27 : vector<1x1x8xf32> to vector<1x8x8xf32>
    %55 = arith.addf %53, %54 : vector<1x8x8xf32>
    %cst_32 = arith.constant dense<0xFF800000> : vector<1x8xf32>
    %56 = vector.multi_reduction <maximumf>, %55, %cst_32 [2] : vector<1x8x8xf32> to vector<1x8xf32>
    %57 = vector.shape_cast %56 : vector<1x8xf32> to vector<1x8x1xf32>
    %58 = vector.broadcast %57 : vector<1x8x1xf32> to vector<1x8x8xf32>
    %59 = arith.subf %55, %58 : vector<1x8x8xf32>
    %60 = math.exp %59 : vector<1x8x8xf32>
    %cst_33 = arith.constant dense<0.000000e+00> : vector<1x8xf32>
    %61 = vector.multi_reduction <add>, %60, %cst_33 [2] : vector<1x8x8xf32> to vector<1x8xf32>
    %62 = vector.shape_cast %61 : vector<1x8xf32> to vector<1x8x1xf32>
    %63 = tpu.reciprocal %62 : vector<1x8x1xf32> -> vector<1x8x1xf32>
    %64 = vector.broadcast %63 : vector<1x8x1xf32> to vector<1x8x8xf32>
    %65 = arith.mulf %60, %64 : vector<1x8x8xf32>
    "tpu.trace_start"() <{level = 10 : i32, message = "bqk,bkd->bqd"}> : () -> ()
    %cst_34 = arith.constant dense<0.000000e+00> : vector<1x8x8xf32>
    %66 = tpu.matmul %65, %52, %cst_34 {dimension_numbers = #tpu.dot_dimension_numbers<[2], [1], [1], [2], [0, 0, 0, 1, 1, 2], [0], [0]>} : vector<1x8x8xf32>, vector<1x8x8xf32>, vector<1x8x8xf32> -> vector<1x8x8xf32>
    "tpu.trace_stop"() : () -> ()
    %c8 = arith.constant 8 : index
    %c0_35 = arith.constant 0 : index
    %67 = vector.load %arg10[%c8, %c0_35] : memref<32x32xf32, #tpu.memory_space<vmem>>, vector<8x32xf32>
    %68 = vector.shape_cast %66 : vector<1x8x8xf32> to vector<8x8xf32>
    %cst_36 = arith.constant dense<0.000000e+00> : vector<8x32xf32>
    %69 = tpu.matmul %68, %67, %cst_36 {dimension_numbers = #tpu.dot_dimension_numbers<[1], [0], [0], [1], [0, 0, 1, 1], [], []>} : vector<8x8xf32>, vector<8x32xf32>, vector<8x32xf32> -> vector<8x32xf32>
    %70 = arith.addf %49, %69 : vector<8x32xf32>
    %71 = vector.extract_strided_slice %19 {offsets = [0, 0, 16], sizes = [1, 8, 8], strides = [1, 1, 1]} : vector<1x8x32xf32> to vector<1x8x8xf32>
    %72 = vector.extract_strided_slice %20 {offsets = [0, 0, 16], sizes = [1, 8, 8], strides = [1, 1, 1]} : vector<1x8x32xf32> to vector<1x8x8xf32>
    %73 = vector.extract_strided_slice %21 {offsets = [0, 0, 16], sizes = [1, 8, 8], strides = [1, 1, 1]} : vector<1x8x32xf32> to vector<1x8x8xf32>
    "tpu.trace_start"() <{level = 10 : i32, message = "bqd,bkd->bqk"}> : () -> ()
    %cst_37 = arith.constant dense<0.000000e+00> : vector<1x8x8xf32>
    %74 = tpu.matmul %71, %72, %cst_37 {dimension_numbers = #tpu.dot_dimension_numbers<[2], [2], [1], [1], [0, 0, 0, 1, 1, 1], [0], [0]>} : vector<1x8x8xf32>, vector<1x8x8xf32>, vector<1x8x8xf32> -> vector<1x8x8xf32>
    "tpu.trace_stop"() : () -> ()
    %75 = vector.broadcast %27 : vector<1x1x8xf32> to vector<1x8x8xf32>
    %76 = arith.addf %74, %75 : vector<1x8x8xf32>
    %cst_38 = arith.constant dense<0xFF800000> : vector<1x8xf32>
    %77 = vector.multi_reduction <maximumf>, %76, %cst_38 [2] : vector<1x8x8xf32> to vector<1x8xf32>
    %78 = vector.shape_cast %77 : vector<1x8xf32> to vector<1x8x1xf32>
    %79 = vector.broadcast %78 : vector<1x8x1xf32> to vector<1x8x8xf32>
    %80 = arith.subf %76, %79 : vector<1x8x8xf32>
    %81 = math.exp %80 : vector<1x8x8xf32>
    %cst_39 = arith.constant dense<0.000000e+00> : vector<1x8xf32>
    %82 = vector.multi_reduction <add>, %81, %cst_39 [2] : vector<1x8x8xf32> to vector<1x8xf32>
    %83 = vector.shape_cast %82 : vector<1x8xf32> to vector<1x8x1xf32>
    %84 = tpu.reciprocal %83 : vector<1x8x1xf32> -> vector<1x8x1xf32>
    %85 = vector.broadcast %84 : vector<1x8x1xf32> to vector<1x8x8xf32>
    %86 = arith.mulf %81, %85 : vector<1x8x8xf32>
    "tpu.trace_start"() <{level = 10 : i32, message = "bqk,bkd->bqd"}> : () -> ()
    %cst_40 = arith.constant dense<0.000000e+00> : vector<1x8x8xf32>
    %87 = tpu.matmul %86, %73, %cst_40 {dimension_numbers = #tpu.dot_dimension_numbers<[2], [1], [1], [2], [0, 0, 0, 1, 1, 2], [0], [0]>} : vector<1x8x8xf32>, vector<1x8x8xf32>, vector<1x8x8xf32> -> vector<1x8x8xf32>
    "tpu.trace_stop"() : () -> ()
    %c16 = arith.constant 16 : index
    %c0_41 = arith.constant 0 : index
    %88 = vector.load %arg10[%c16, %c0_41] : memref<32x32xf32, #tpu.memory_space<vmem>>, vector<8x32xf32>
    %89 = vector.shape_cast %87 : vector<1x8x8xf32> to vector<8x8xf32>
    %cst_42 = arith.constant dense<0.000000e+00> : vector<8x32xf32>
    %90 = tpu.matmul %89, %88, %cst_42 {dimension_numbers = #tpu.dot_dimension_numbers<[1], [0], [0], [1], [0, 0, 1, 1], [], []>} : vector<8x8xf32>, vector<8x32xf32>, vector<8x32xf32> -> vector<8x32xf32>
    %91 = arith.addf %70, %90 : vector<8x32xf32>
    %92 = vector.extract_strided_slice %19 {offsets = [0, 0, 24], sizes = [1, 8, 8], strides = [1, 1, 1]} : vector<1x8x32xf32> to vector<1x8x8xf32>
    %93 = vector.extract_strided_slice %20 {offsets = [0, 0, 24], sizes = [1, 8, 8], strides = [1, 1, 1]} : vector<1x8x32xf32> to vector<1x8x8xf32>
    %94 = vector.extract_strided_slice %21 {offsets = [0, 0, 24], sizes = [1, 8, 8], strides = [1, 1, 1]} : vector<1x8x32xf32> to vector<1x8x8xf32>
    "tpu.trace_start"() <{level = 10 : i32, message = "bqd,bkd->bqk"}> : () -> ()
    %cst_43 = arith.constant dense<0.000000e+00> : vector<1x8x8xf32>
    %95 = tpu.matmul %92, %93, %cst_43 {dimension_numbers = #tpu.dot_dimension_numbers<[2], [2], [1], [1], [0, 0, 0, 1, 1, 1], [0], [0]>} : vector<1x8x8xf32>, vector<1x8x8xf32>, vector<1x8x8xf32> -> vector<1x8x8xf32>
    "tpu.trace_stop"() : () -> ()
    %96 = vector.broadcast %27 : vector<1x1x8xf32> to vector<1x8x8xf32>
    %97 = arith.addf %95, %96 : vector<1x8x8xf32>
    %cst_44 = arith.constant dense<0xFF800000> : vector<1x8xf32>
    %98 = vector.multi_reduction <maximumf>, %97, %cst_44 [2] : vector<1x8x8xf32> to vector<1x8xf32>
    %99 = vector.shape_cast %98 : vector<1x8xf32> to vector<1x8x1xf32>
    %100 = vector.broadcast %99 : vector<1x8x1xf32> to vector<1x8x8xf32>
    %101 = arith.subf %97, %100 : vector<1x8x8xf32>
    %102 = math.exp %101 : vector<1x8x8xf32>
    %cst_45 = arith.constant dense<0.000000e+00> : vector<1x8xf32>
    %103 = vector.multi_reduction <add>, %102, %cst_45 [2] : vector<1x8x8xf32> to vector<1x8xf32>
    %104 = vector.shape_cast %103 : vector<1x8xf32> to vector<1x8x1xf32>
    %105 = tpu.reciprocal %104 : vector<1x8x1xf32> -> vector<1x8x1xf32>
    %106 = vector.broadcast %105 : vector<1x8x1xf32> to vector<1x8x8xf32>
    %107 = arith.mulf %102, %106 : vector<1x8x8xf32>
    "tpu.trace_start"() <{level = 10 : i32, message = "bqk,bkd->bqd"}> : () -> ()
    %cst_46 = arith.constant dense<0.000000e+00> : vector<1x8x8xf32>
    %108 = tpu.matmul %107, %94, %cst_46 {dimension_numbers = #tpu.dot_dimension_numbers<[2], [1], [1], [2], [0, 0, 0, 1, 1, 2], [0], [0]>} : vector<1x8x8xf32>, vector<1x8x8xf32>, vector<1x8x8xf32> -> vector<1x8x8xf32>
    "tpu.trace_stop"() : () -> ()
    %c24 = arith.constant 24 : index
    %c0_47 = arith.constant 0 : index
    %109 = vector.load %arg10[%c24, %c0_47] : memref<32x32xf32, #tpu.memory_space<vmem>>, vector<8x32xf32>
    %110 = vector.shape_cast %108 : vector<1x8x8xf32> to vector<8x8xf32>
    %cst_48 = arith.constant dense<0.000000e+00> : vector<8x32xf32>
    %111 = tpu.matmul %110, %109, %cst_48 {dimension_numbers = #tpu.dot_dimension_numbers<[1], [0], [0], [1], [0, 0, 1, 1], [], []>} : vector<8x8xf32>, vector<8x32xf32>, vector<8x32xf32> -> vector<8x32xf32>
    %112 = arith.addf %91, %111 : vector<8x32xf32>
    %c0_49 = arith.constant 0 : index
    %c0_50 = arith.constant 0 : index
    %113 = vector.load %arg11[%c0_49, %c0_50] : memref<1x32xf32, #tpu.memory_space<vmem>>, vector<1x32xf32>
    %114 = vector.broadcast %113 : vector<1x32xf32> to vector<8x32xf32>
    %115 = arith.addf %112, %114 : vector<8x32xf32>
    %c0_51 = arith.constant 0 : index
    %c0_52 = arith.constant 0 : index
    %116 = vector.load %arg12[%c0_51, %c0_52] : memref<8x32xf32, #tpu.memory_space<vmem>>, vector<8x32xf32>
    tpu.vector_store %arg12[%c0_51, %c0_52], %115 {strides = array<i32>} : memref<8x32xf32, #tpu.memory_space<vmem>>, vector<8x32xf32>,
    return
  }
  func.func @transform_0(%arg0: i32) -> (i32, i32) {
    %c0_i32 = arith.constant 0 : i32
    %c0_i32_0 = arith.constant 0 : i32
    return %arg0, %c0_i32 : i32, i32
  }
  func.func @transform_1(%arg0: i32) -> (i32, i32) {
    %c0_i32 = arith.constant 0 : i32
    %c0_i32_0 = arith.constant 0 : i32
    return %arg0, %c0_i32 : i32, i32
  }
  func.func @transform_2(%arg0: i32) -> (i32, i32, i32) {
    %c0_i32 = arith.constant 0 : i32
    %c0_i32_0 = arith.constant 0 : i32
    %c0_i32_1 = arith.constant 0 : i32
    return %arg0, %c0_i32, %c0_i32_0 : i32, i32, i32
  }
  func.func @transform_3(%arg0: i32) -> (i32, i32) {
    %c0_i32 = arith.constant 0 : i32
    %c0_i32_0 = arith.constant 0 : i32
    %c0_i32_1 = arith.constant 0 : i32
    return %c0_i32, %c0_i32_0 : i32, i32
  }
  func.func @transform_4(%arg0: i32) -> (i32, i32) {
    %c0_i32 = arith.constant 0 : i32
    %c0_i32_0 = arith.constant 0 : i32
    %c0_i32_1 = arith.constant 0 : i32
    return %c0_i32, %c0_i32_0 : i32, i32
  }
  func.func @transform_5(%arg0: i32) -> (i32, i32) {
    %c0_i32 = arith.constant 0 : i32
    %c0_i32_0 = arith.constant 0 : i32
    %c0_i32_1 = arith.constant 0 : i32
    return %c0_i32, %c0_i32_0 : i32, i32
  }
  func.func @transform_6(%arg0: i32) -> (i32, i32) {
    %c0_i32 = arith.constant 0 : i32
    %c0_i32_0 = arith.constant 0 : i32
    %c0_i32_1 = arith.constant 0 : i32
    return %c0_i32, %c0_i32_0 : i32, i32
  }
  func.func @transform_7(%arg0: i32) -> (i32, i32) {
    %c0_i32 = arith.constant 0 : i32
    %c0_i32_0 = arith.constant 0 : i32
    %c0_i32_1 = arith.constant 0 : i32
    return %c0_i32, %c0_i32_0 : i32, i32
  }
  func.func @transform_8(%arg0: i32) -> (i32, i32) {
    %c0_i32 = arith.constant 0 : i32
    %c0_i32_0 = arith.constant 0 : i32
    %c0_i32_1 = arith.constant 0 : i32
    return %c0_i32, %c0_i32_0 : i32, i32
  }
  func.func @transform_9(%arg0: i32) -> (i32, i32) {
    %c0_i32 = arith.constant 0 : i32
    %c0_i32_0 = arith.constant 0 : i32
    %c0_i32_1 = arith.constant 0 : i32
    return %c0_i32, %c0_i32_0 : i32, i32
  }
  func.func @transform_10(%arg0: i32) -> (i32, i32) {
    %c0_i32 = arith.constant 0 : i32
    %c0_i32_0 = arith.constant 0 : i32
    %c0_i32_1 = arith.constant 0 : i32
    return %c0_i32, %c0_i32_0 : i32, i32
  }
  func.func @transform_11(%arg0: i32) -> (i32, i32) {
    %c0_i32 = arith.constant 0 : i32
    %c0_i32_0 = arith.constant 0 : i32
    return %arg0, %c0_i32 : i32, i32
  }
}

</mosaic_0001>

<llo_original>
// kernel: tpu_custom_call.1
$region0: #{tpu_custom_call.1}
  #allocation0 [shape = 'u32[]', space=smem, size = 0x4, offset = 0x4, fixed_abs, tag = 'smem constant byte address 0x4 - core index']
  #allocation1 [shape = 'u32[144,128]{1,0:T(1,128)}', space=vmem, size = 0x12000, scoped, tag = 'internal scratch']
  %s0 = inlined_call_operand.hbm [shape: f32[16,32], index: 0, kind: input, shape index: {}]
  %s1 = inlined_call_operand.hbm [shape: f32[16,32], index: 1, kind: input, shape index: {}]
  %s2 = inlined_call_operand.vmem [shape: s32[2,1,8], index: 2, kind: input, shape index: {}]
  %s3 = inlined_call_operand.hbm [shape: f32[32,32], index: 3, kind: input, shape index: {}]
  %s4 = inlined_call_operand.hbm [shape: f32[1,32], index: 4, kind: input, shape index: {}]
  %s5 = inlined_call_operand.hbm [shape: f32[32,32], index: 5, kind: input, shape index: {}]
  %s6 = inlined_call_operand.hbm [shape: f32[1,32], index: 6, kind: input, shape index: {}]
  %s7 = inlined_call_operand.hbm [shape: f32[32,32], index: 7, kind: input, shape index: {}]
  %s8 = inlined_call_operand.hbm [shape: f32[1,32], index: 8, kind: input, shape index: {}]
  %s9 = inlined_call_operand.vmem [shape: f32[32,32], index: 9, kind: input, shape index: {}]
  %s10 = inlined_call_operand.vmem [shape: f32[1,32], index: 10, kind: input, shape index: {}]
  %s11 = inlined_call_operand.hbm [shape: f32[16,32], index: 11, kind: output, shape index: {}]
  %s12 = sld [smem:[#allocation0]]
  $region109: #{tpu_custom_call.1} parent=0
    _
  %s14 = ssub.s32 1, %s12
  %s15 = scalar_select 0, %s14, %s12
  $region1: #{tpu_custom_call.1} parent=0
    #allocation2 [shape = 'u8[8192]{0}', space=vmem, size = 0x2000, scoped, tag = 'input window, operand 0']
    #allocation3 [shape = 's32[2]{0}', space=sflag, size = 0x8, scoped, tag = 'scoped memory for tpu_custom_call.1']
    #allocation4 [shape = 's32[2]{0}', space=sflag, size = 0x8, scoped, tag = 'scoped memory for tpu_custom_call.1']
    #allocation5 [shape = 'u8[8192]{0}', space=vmem, size = 0x2000, scoped, tag = 'input window, operand 1']
    #allocation6 [shape = 's32[2]{0}', space=sflag, size = 0x8, scoped, tag = 'scoped memory for tpu_custom_call.1']
    #allocation7 [shape = 'u8[16384]{0}', space=vmem, size = 0x4000, scoped, tag = 'input window, operand 3, single buffered']
    #allocation8 [shape = 'u8[512]{0}', space=vmem, size = 0x400, scoped, tag = 'input window, operand 4, single buffered']
    #allocation9 [shape = 's32[1]{0}', space=sflag, size = 0x4, scoped, tag = 'scoped memory for tpu_custom_call.1']
    #allocation10 [shape = 'u8[16384]{0}', space=vmem, size = 0x4000, scoped, tag = 'input window, operand 5, single buffered']
    #allocation11 [shape = 'u8[512]{0}', space=vmem, size = 0x400, scoped, tag = 'input window, operand 6, single buffered']
    #allocation12 [shape = 's32[1]{0}', space=sflag, size = 0x4, scoped, tag = 'scoped memory for tpu_custom_call.1']
    #allocation13 [shape = 'u8[16384]{0}', space=vmem, size = 0x4000, scoped, tag = 'input window, operand 7, single buffered']
    #allocation14 [shape = 'u8[512]{0}', space=vmem, size = 0x400, scoped, tag = 'input window, operand 8, single buffered']
    #allocation15 [shape = 's32[1]{0}', space=sflag, size = 0x4, scoped, tag = 'scoped memory for tpu_custom_call.1']
    #allocation16 [shape = 'u8[8192]{0}', space=vmem, size = 0x2000, scoped, tag = 'output window, operand 0']
    %16 = vsyncpa [#allocation3], 0
    %s17 = scalar_lea.sflag [#allocation3], 1
    %18 = vsyncpa %s17, 0
    %19 = vsyncpa [#allocation6], 0
    %s20 = scalar_lea.sflag [#allocation6], 1
    %21 = vsyncpa %s20, 0
    %22 = vsyncpa [#allocation9], 0
    %23 = vsyncpa [#allocation12], 0
    %24 = vsyncpa [#allocation15], 0
    %25 = vsyncpa [#allocation4], 0
    %s26 = scalar_lea.sflag [#allocation4], 1
    %27 = vsyncpa %s26, 0
    loop: start=0, step=1, limit=4
    $region2: #{tpu_custom_call.1} parent=1 // loop_pre_header
      _
    $region3: #{tpu_custom_call.1} parent=1 // loop_header
      %s29 = sphi 0, %s33
      %p30 = scmp.ge.s32.totalorder %s29, 4
      %s39 = sphi 0, %s41
      %s42 = sphi 0, %s39
      %s43 = sphi 0, %s42
      %s59 = sphi 0, %s43
      %s65 = sphi 0, %s67
      %s68 = sphi 0, %s65
      %s69 = sphi 0, %s68
      %s85 = sphi 0, %s69
      %s91 = sphi 0, %s93
      %s94 = sphi 0, %s91
      %s95 = sphi 0, %s94
      %s111 = sphi 0, %s95
      %s115 = sphi 0, %s115
      %s117 = sphi 0, %s115
      %s118 = sphi 0, %s117
      %s132 = sphi 0, %s118
      %s136 = sphi 0, %s136
      %s138 = sphi 0, %s136
      %s139 = sphi 0, %s138
      %s153 = sphi 0, %s139
      %s157 = sphi 0, %s157
      %s159 = sphi 0, %s157
      %s160 = sphi 0, %s159
      %s174 = sphi 0, %s160
      %s178 = sphi 0, %s178
      %s180 = sphi 0, %s178
      %s181 = sphi 0, %s180
      %s195 = sphi 0, %s181
      %s199 = sphi 0, %s199
      %s201 = sphi 0, %s199
      %s202 = sphi 0, %s201
      %s216 = sphi 0, %s202
      %s220 = sphi 0, %s220
      %s222 = sphi 0, %s220
      %s223 = sphi 0, %s222
      %s237 = sphi 0, %s223
      %s241 = sphi 0, %s241
      %s243 = sphi 0, %s241
      %s244 = sphi 0, %s243
      %s258 = sphi 0, %s244
      %s262 = sphi 0, %s262
      %s264 = sphi 0, %s262
      %s265 = sphi 0, %s264
      %s279 = sphi 0, %s265
      %s285 = sphi 0, %s287
      %s288 = sphi 0, %s285
      %s289 = sphi 0, %s288
      %s305 = sphi 0, %s289
    $region4: #{tpu_custom_call.1} parent=1 // loop_header_branch
      %32 = sbr.rel (%p30) target = $region8
    $region5: #{tpu_custom_call.1} parent=1 // loop_body
      %s34 = ssub.s32 %s29, 1
      %s35 = ssub.s32 %s29, 2
      %s36 = sadd.s32 %s29, 1
      %s37 = ssub.s32 %s29, %s36
      %p38 = scmp.eq.s32.totalorder %s37, 0
      %s40 = sadd.s32 %s39, 1
      %s41 = scalar_select %p38, %s39, %s40
      %p44 = pneg %p38
      %p45 = scmp.eq.s32.totalorder %s29, 1
      %p46 = por %p44, %p45
      %p47 = scmp.ne.s32.totalorder %s39, %s42
      %p48 = scmp.eq.s32.totalorder %s29, 0
      %p49 = por %p47, %p48
      %p50 = scmp.ne.s32.totalorder %s39, %s42
      %p51 = scmp.eq.s32.totalorder %s34, 1
      %p52 = por %p50, %p51
      %p53 = scmp.ne.s32.totalorder %s42, %s43
      %p54 = scmp.eq.s32.totalorder %s34, 0
      %p55 = por %p53, %p54
      %p56 = scmp.ne.s32.totalorder %s42, %s43
      %p57 = scmp.eq.s32.totalorder %s35, 1
      %p58 = por %p56, %p57
      %p60 = scmp.ne.s32.totalorder %s43, %s59
      %p61 = scmp.eq.s32.totalorder %s35, 0
      %p62 = por %p60, %p61
      %s63 = ssub.s32 %s29, %s36
      %p64 = scmp.eq.s32.totalorder %s63, 0
      %s66 = sadd.s32 %s65, 1
      %s67 = scalar_select %p64, %s65, %s66
      %p70 = pneg %p64
      %p71 = scmp.eq.s32.totalorder %s29, 1
      %p72 = por %p70, %p71
      %p73 = scmp.ne.s32.totalorder %s65, %s68
      %p74 = scmp.eq.s32.totalorder %s29, 0
      %p75 = por %p73, %p74
      %p76 = scmp.ne.s32.totalorder %s65, %s68
      %p77 = scmp.eq.s32.totalorder %s34, 1
      %p78 = por %p76, %p77
      %p79 = scmp.ne.s32.totalorder %s68, %s69
      %p80 = scmp.eq.s32.totalorder %s34, 0
      %p81 = por %p79, %p80
      %p82 = scmp.ne.s32.totalorder %s68, %s69
      %p83 = scmp.eq.s32.totalorder %s35, 1
      %p84 = por %p82, %p83
      %p86 = scmp.ne.s32.totalorder %s69, %s85
      %p87 = scmp.eq.s32.totalorder %s35, 0
      %p88 = por %p86, %p87
      %s89 = ssub.s32 %s29, %s36
      %p90 = scmp.eq.s32.totalorder %s89, 0
      %s92 = sadd.s32 %s91, 1
      %s93 = scalar_select %p90, %s91, %s92
      %p96 = pneg %p90
      %p97 = scmp.eq.s32.totalorder %s29, 1
      %p98 = por %p96, %p97
      %p99 = scmp.ne.s32.totalorder %s91, %s94
      %p100 = scmp.eq.s32.totalorder %s29, 0
      %p101 = por %p99, %p100
      %p102 = scmp.ne.s32.totalorder %s91, %s94
      %p103 = scmp.eq.s32.totalorder %s34, 1
      %p104 = por %p102, %p103
      %p105 = scmp.ne.s32.totalorder %s94, %s95
      %p106 = scmp.eq.s32.totalorder %s34, 0
      %p107 = por %p105, %p106
      %p108 = scmp.ne.s32.totalorder %s94, %s95
      %p109 = scmp.eq.s32.totalorder %s35, 1
      %p110 = por %p108, %p109
      %p112 = scmp.ne.s32.totalorder %s95, %s111
      %p113 = scmp.eq.s32.totalorder %s35, 0
      %p114 = por %p112, %p113
      %s116 = sadd.s32 %s115, 1
      %p119 = scmp.eq.s32.totalorder %s29, 1
      %p120 = scmp.ne.s32.totalorder %s115, %s117
      %p121 = scmp.eq.s32.totalorder %s29, 0
      %p122 = por %p120, %p121
      %p123 = scmp.ne.s32.totalorder %s115, %s117
      %p124 = scmp.eq.s32.totalorder %s34, 1
      %p125 = por %p123, %p124
      %p126 = scmp.ne.s32.totalorder %s117, %s118
      %p127 = scmp.eq.s32.totalorder %s34, 0
      %p128 = por %p126, %p127
      %p129 = scmp.ne.s32.totalorder %s117, %s118
      %p130 = scmp.eq.s32.totalorder %s35, 1
      %p131 = por %p129, %p130
      %p133 = scmp.ne.s32.totalorder %s118, %s132
      %p134 = scmp.eq.s32.totalorder %s35, 0
      %p135 = por %p133, %p134
      %s137 = sadd.s32 %s136, 1
      %p140 = scmp.eq.s32.totalorder %s29, 1
      %p141 = scmp.ne.s32.totalorder %s136, %s138
      %p142 = scmp.eq.s32.totalorder %s29, 0
      %p143 = por %p141, %p142
      %p144 = scmp.ne.s32.totalorder %s136, %s138
      %p145 = scmp.eq.s32.totalorder %s34, 1
      %p146 = por %p144, %p145
      %p147 = scmp.ne.s32.totalorder %s138, %s139
      %p148 = scmp.eq.s32.totalorder %s34, 0
      %p149 = por %p147, %p148
      %p150 = scmp.ne.s32.totalorder %s138, %s139
      %p151 = scmp.eq.s32.totalorder %s35, 1
      %p152 = por %p150, %p151
      %p154 = scmp.ne.s32.totalorder %s139, %s153
      %p155 = scmp.eq.s32.totalorder %s35, 0
      %p156 = por %p154, %p155
      %s158 = sadd.s32 %s157, 1
      %p161 = scmp.eq.s32.totalorder %s29, 1
      %p162 = scmp.ne.s32.totalorder %s157, %s159
      %p163 = scmp.eq.s32.totalorder %s29, 0
      %p164 = por %p162, %p163
      %p165 = scmp.ne.s32.totalorder %s157, %s159
      %p166 = scmp.eq.s32.totalorder %s34, 1
      %p167 = por %p165, %p166
      %p168 = scmp.ne.s32.totalorder %s159, %s160
      %p169 = scmp.eq.s32.totalorder %s34, 0
      %p170 = por %p168, %p169
      %p171 = scmp.ne.s32.totalorder %s159, %s160
      %p172 = scmp.eq.s32.totalorder %s35, 1
      %p173 = por %p171, %p172
      %p175 = scmp.ne.s32.totalorder %s160, %s174
      %p176 = scmp.eq.s32.totalorder %s35, 0
      %p177 = por %p175, %p176
      %s179 = sadd.s32 %s178, 1
      %p182 = scmp.eq.s32.totalorder %s29, 1
      %p183 = scmp.ne.s32.totalorder %s178, %s180
      %p184 = scmp.eq.s32.totalorder %s29, 0
      %p185 = por %p183, %p184
      %p186 = scmp.ne.s32.totalorder %s178, %s180
      %p187 = scmp.eq.s32.totalorder %s34, 1
      %p188 = por %p186, %p187
      %p189 = scmp.ne.s32.totalorder %s180, %s181
      %p190 = scmp.eq.s32.totalorder %s34, 0
      %p191 = por %p189, %p190
      %p192 = scmp.ne.s32.totalorder %s180, %s181
      %p193 = scmp.eq.s32.totalorder %s35, 1
      %p194 = por %p192, %p193
      %p196 = scmp.ne.s32.totalorder %s181, %s195
      %p197 = scmp.eq.s32.totalorder %s35, 0
      %p198 = por %p196, %p197
      %s200 = sadd.s32 %s199, 1
      %p203 = scmp.eq.s32.totalorder %s29, 1
      %p204 = scmp.ne.s32.totalorder %s199, %s201
      %p205 = scmp.eq.s32.totalorder %s29, 0
      %p206 = por %p204, %p205
      %p207 = scmp.ne.s32.totalorder %s199, %s201
      %p208 = scmp.eq.s32.totalorder %s34, 1
      %p209 = por %p207, %p208
      %p210 = scmp.ne.s32.totalorder %s201, %s202
      %p211 = scmp.eq.s32.totalorder %s34, 0
      %p212 = por %p210, %p211
      %p213 = scmp.ne.s32.totalorder %s201, %s202
      %p214 = scmp.eq.s32.totalorder %s35, 1
      %p215 = por %p213, %p214
      %p217 = scmp.ne.s32.totalorder %s202, %s216
      %p218 = scmp.eq.s32.totalorder %s35, 0
      %p219 = por %p217, %p218
      %s221 = sadd.s32 %s220, 1
      %p224 = scmp.eq.s32.totalorder %s29, 1
      %p225 = scmp.ne.s32.totalorder %s220, %s222
      %p226 = scmp.eq.s32.totalorder %s29, 0
      %p227 = por %p225, %p226
      %p228 = scmp.ne.s32.totalorder %s220, %s222
      %p229 = scmp.eq.s32.totalorder %s34, 1
      %p230 = por %p228, %p229
      %p231 = scmp.ne.s32.totalorder %s222, %s223
      %p232 = scmp.eq.s32.totalorder %s34, 0
      %p233 = por %p231, %p232
      %p234 = scmp.ne.s32.totalorder %s222, %s223
      %p235 = scmp.eq.s32.totalorder %s35, 1
      %p236 = por %p234, %p235
      %p238 = scmp.ne.s32.totalorder %s223, %s237
      %p239 = scmp.eq.s32.totalorder %s35, 0
      %p240 = por %p238, %p239
      %s242 = sadd.s32 %s241, 1
      %p245 = scmp.eq.s32.totalorder %s29, 1
      %p246 = scmp.ne.s32.totalorder %s241, %s243
      %p247 = scmp.eq.s32.totalorder %s29, 0
      %p248 = por %p246, %p247
      %p249 = scmp.ne.s32.totalorder %s241, %s243
      %p250 = scmp.eq.s32.totalorder %s34, 1
      %p251 = por %p249, %p250
      %p252 = scmp.ne.s32.totalorder %s243, %s244
      %p253 = scmp.eq.s32.totalorder %s34, 0
      %p254 = por %p252, %p253
      %p255 = scmp.ne.s32.totalorder %s243, %s244
      %p256 = scmp.eq.s32.totalorder %s35, 1
      %p257 = por %p255, %p256
      %p259 = scmp.ne.s32.totalorder %s244, %s258
      %p260 = scmp.eq.s32.totalorder %s35, 0
      %p261 = por %p259, %p260
      %s263 = sadd.s32 %s262, 1
      %p266 = scmp.eq.s32.totalorder %s29, 1
      %p267 = scmp.ne.s32.totalorder %s262, %s264
      %p268 = scmp.eq.s32.totalorder %s29, 0
      %p269 = por %p267, %p268
      %p270 = scmp.ne.s32.totalorder %s262, %s264
      %p271 = scmp.eq.s32.totalorder %s34, 1
      %p272 = por %p270, %p271
      %p273 = scmp.ne.s32.totalorder %s264, %s265
      %p274 = scmp.eq.s32.totalorder %s34, 0
      %p275 = por %p273, %p274
      %p276 = scmp.ne.s32.totalorder %s264, %s265
      %p277 = scmp.eq.s32.totalorder %s35, 1
      %p278 = por %p276, %p277
      %p280 = scmp.ne.s32.totalorder %s265, %s279
      %p281 = scmp.eq.s32.totalorder %s35, 0
      %p282 = por %p280, %p281
      %s283 = ssub.s32 %s29, %s36
      %p284 = scmp.eq.s32.totalorder %s283, 0
      %s286 = sadd.s32 %s285, 1
      %s287 = scalar_select %p284, %s285, %s286
      %p290 = pneg %p284
      %p291 = scmp.eq.s32.totalorder %s29, 1
      %p292 = por %p290, %p291
      %p293 = scmp.ne.s32.totalorder %s285, %s288
      %p294 = scmp.eq.s32.totalorder %s29, 0
      %p295 = por %p293, %p294
      %p296 = scmp.ne.s32.totalorder %s285, %s288
      %p297 = scmp.eq.s32.totalorder %s34, 1
      %p298 = por %p296, %p297
      %p299 = scmp.ne.s32.totalorder %s288, %s289
      %p300 = scmp.eq.s32.totalorder %s34, 0
      %p301 = por %p299, %p300
      %p302 = scmp.ne.s32.totalorder %s288, %s289
      %p303 = scmp.eq.s32.totalorder %s35, 1
      %p304 = por %p302, %p303
      %p306 = scmp.ne.s32.totalorder %s289, %s305
      %p307 = scmp.eq.s32.totalorder %s35, 0
      %p308 = por %p306, %p307
      %p309 = scmp.le.s32.totalorder 1, %s29
      %p310 = scmp.lt.s32.totalorder %s29, 3
      %p311 = pnand %p309, %p310
      %p312 = pneg %p311
      // Predicated region
      $region9: #{tpu_custom_call.1} parent=5 // pred_check
        _
      $region10: #{tpu_custom_call.1} parent=5 // pred_check_branch
        %314 = sbr.rel (%p311) target = $region12
      $region11: #{tpu_custom_call.1} parent=5 // pred_region
        %s315 = ssub.s32 %s29, 1
        // Predicated region
        $region13: #{tpu_custom_call.1} parent=11 // pred_check
          %p316 = pneg %p128
        $region14: #{tpu_custom_call.1} parent=11 // pred_check_branch
          %318 = sbr.rel (%p316) target = $region16
        $region15: #{tpu_custom_call.1} parent=11 // pred_region
          %s320 = ssub.s32 512, 512
          %321 = vsyncadd [#allocation6], %s320
          %s322 = sshll.u32 [#allocation7], 4
          %s323 = int_to_ptr.vmem [resolvable:$true] %s322
          %328 = dma.hbm_to_vmem [thread:$0]  %s3, 512, %s323, [#allocation6], 128, 128, 8
        $region16: #{tpu_custom_call.1} parent=11 // pred_fallthru
          _
        // Predicated region
        $region17: #{tpu_custom_call.1} parent=11 // pred_check
          %p329 = pneg %p149
        $region18: #{tpu_custom_call.1} parent=11 // pred_check_branch
          %331 = sbr.rel (%p329) target = $region20
        $region19: #{tpu_custom_call.1} parent=11 // pred_region
          %s333 = ssub.s32 16, 16
          %334 = vsyncadd [#allocation9], %s333
          %s336 = sshll.u32 [#allocation8], 4
          %s337 = int_to_ptr.vmem [resolvable:$true] %s336
          %339 = dma.hbm_to_vmem [thread:$0]  %s4, 16, %s337, [#allocation9]
        $region20: #{tpu_custom_call.1} parent=11 // pred_fallthru
          _
        // Predicated region
        $region21: #{tpu_custom_call.1} parent=11 // pred_check
          %p340 = pneg %p170
        $region22: #{tpu_custom_call.1} parent=11 // pred_check_branch
          %342 = sbr.rel (%p340) target = $region24
        $region23: #{tpu_custom_call.1} parent=11 // pred_region
          %s344 = ssub.s32 512, 512
          %345 = vsyncadd [#allocation9], %s344
          %s346 = sshll.u32 [#allocation10], 4
          %s347 = int_to_ptr.vmem [resolvable:$true] %s346
          %352 = dma.hbm_to_vmem [thread:$0]  %s5, 512, %s347, [#allocation9], 128, 128, 8
        $region24: #{tpu_custom_call.1} parent=11 // pred_fallthru
          _
        // Predicated region
        $region25: #{tpu_custom_call.1} parent=11 // pred_check
          %p353 = pneg %p191
        $region26: #{tpu_custom_call.1} parent=11 // pred_check_branch
          %355 = sbr.rel (%p353) target = $region28
        $region27: #{tpu_custom_call.1} parent=11 // pred_region
          %s357 = ssub.s32 16, 16
          %358 = vsyncadd [#allocation12], %s357
          %s360 = sshll.u32 [#allocation11], 4
          %s361 = int_to_ptr.vmem [resolvable:$true] %s360
          %363 = dma.hbm_to_vmem [thread:$0]  %s6, 16, %s361, [#allocation12]
        $region28: #{tpu_custom_call.1} parent=11 // pred_fallthru
          _
        // Predicated region
        $region29: #{tpu_custom_call.1} parent=11 // pred_check
          %p364 = pneg %p212
        $region30: #{tpu_custom_call.1} parent=11 // pred_check_branch
          %366 = sbr.rel (%p364) target = $region32
        $region31: #{tpu_custom_call.1} parent=11 // pred_region
          %s368 = ssub.s32 512, 512
          %369 = vsyncadd [#allocation12], %s368
          %s370 = sshll.u32 [#allocation13], 4
          %s371 = int_to_ptr.vmem [resolvable:$true] %s370
          %376 = dma.hbm_to_vmem [thread:$0]  %s7, 512, %s371, [#allocation12], 128, 128, 8
        $region32: #{tpu_custom_call.1} parent=11 // pred_fallthru
          _
        // Predicated region
        $region33: #{tpu_custom_call.1} parent=11 // pred_check
          %p377 = pneg %p233
        $region34: #{tpu_custom_call.1} parent=11 // pred_check_branch
          %379 = sbr.rel (%p377) target = $region36
        $region35: #{tpu_custom_call.1} parent=11 // pred_region
          %s381 = ssub.s32 16, 16
          %382 = vsyncadd [#allocation15], %s381
          %s384 = sshll.u32 [#allocation14], 4
          %s385 = int_to_ptr.vmem [resolvable:$true] %s384
          %387 = dma.hbm_to_vmem [thread:$0]  %s8, 16, %s385, [#allocation15]
        $region36: #{tpu_custom_call.1} parent=11 // pred_fallthru
          _
        // Predicated region
        $region37: #{tpu_custom_call.1} parent=11 // pred_check
          %p388 = pneg %p254
        $region38: #{tpu_custom_call.1} parent=11 // pred_check_branch
          %390 = sbr.rel (%p388) target = $region40
        $region39: #{tpu_custom_call.1} parent=11 // pred_region
          _
        $region40: #{tpu_custom_call.1} parent=11 // pred_fallthru
          _
        // Predicated region
        $region41: #{tpu_custom_call.1} parent=11 // pred_check
          %p391 = pneg %p275
        $region42: #{tpu_custom_call.1} parent=11 // pred_check_branch
          %393 = sbr.rel (%p391) target = $region44
        $region43: #{tpu_custom_call.1} parent=11 // pred_region
          _
        $region44: #{tpu_custom_call.1} parent=11 // pred_fallthru
          _
      $region12: #{tpu_custom_call.1} parent=5 // pred_fallthru
        _
      %p394 = scmp.lt.s32.totalorder %s29, 2
      // Predicated region
      $region45: #{tpu_custom_call.1} parent=5 // pred_check
        %p395 = pneg %p394
      $region46: #{tpu_custom_call.1} parent=5 // pred_check_branch
        %397 = sbr.rel (%p395) target = $region48
      $region47: #{tpu_custom_call.1} parent=5 // pred_region
        // Predicated region
        $region49: #{tpu_custom_call.1} parent=47 // pred_check
          %p398 = pneg %p49
        $region50: #{tpu_custom_call.1} parent=47 // pred_check_branch
          %400 = sbr.rel (%p398) target = $region52
        $region51: #{tpu_custom_call.1} parent=47 // pred_region
          %s401 = sand.u32 %s39, 1
          %s402 = scalar_lea.sflag [#allocation3], %s401
          %s403 = sand.u32 %s39, 1
          %s404 = smul.addr %s403, 8
          %s405 = scalar_lea.vmem [#allocation2], %s404
          %s407 = ssub.s32 128, 128
          %408 = vsyncadd %s402, %s407
          %s409 = smul.addr %s29, 128
          %s410 = scalar_lea.hbm %s0, %s409
          %s412 = sshll.u32 %s405, 4
          %s413 = int_to_ptr.vmem [resolvable:$true] %s412
          %415 = dma.hbm_to_vmem [thread:$0]  %s410, 128, %s413, %s402
        $region52: #{tpu_custom_call.1} parent=47 // pred_fallthru
          _
        // Predicated region
        $region53: #{tpu_custom_call.1} parent=47 // pred_check
          %p416 = pneg %p75
        $region54: #{tpu_custom_call.1} parent=47 // pred_check_branch
          %418 = sbr.rel (%p416) target = $region56
        $region55: #{tpu_custom_call.1} parent=47 // pred_region
          %s419 = sand.u32 %s29, 1
          %s420 = scalar_lea.sflag [#allocation6], %s419
          %s421 = sand.u32 %s65, 1
          %s422 = smul.addr %s421, 8
          %s423 = scalar_lea.vmem [#allocation5], %s422
          %s425 = ssub.s32 128, 128
          %426 = vsyncadd %s420, %s425
          %s427 = smul.addr %s29, 128
          %s428 = scalar_lea.hbm %s1, %s427
          %s430 = sshll.u32 %s423, 4
          %s431 = int_to_ptr.vmem [resolvable:$true] %s430
          %433 = dma.hbm_to_vmem [thread:$0]  %s428, 128, %s431, %s420
        $region56: #{tpu_custom_call.1} parent=47 // pred_fallthru
          _
        // Predicated region
        $region57: #{tpu_custom_call.1} parent=47 // pred_check
          %p434 = pneg %p101
        $region58: #{tpu_custom_call.1} parent=47 // pred_check_branch
          %436 = sbr.rel (%p434) target = $region60
        $region59: #{tpu_custom_call.1} parent=47 // pred_region
          %p437 = scmp.lt.s32.totalorder %s29, 1
          %s438 = scalar_select %p437, %s29, 1
          %s439 = scalar_lea.vmem %s2, %s438
        $region60: #{tpu_custom_call.1} parent=47 // pred_fallthru
          _
      $region48: #{tpu_custom_call.1} parent=5 // pred_fallthru
        _
      %p440 = scmp.le.s32.totalorder 1, %s29
      %p441 = scmp.lt.s32.totalorder %s29, 3
      %p442 = pnand %p440, %p441
      %p443 = pneg %p442
      // Predicated region
      $region61: #{tpu_custom_call.1} parent=5 // pred_check
        _
      $region62: #{tpu_custom_call.1} parent=5 // pred_check_branch
        %445 = sbr.rel (%p442) target = $region64
      $region63: #{tpu_custom_call.1} parent=5 // pred_region
        %s446 = ssub.s32 %s29, 1
        %s447 = sand.u32 %s42, 1
        %s448 = scalar_lea.sflag [#allocation3], %s447
        %s449 = sand.u32 %s42, 1
        %s450 = smul.addr %s449, 8
        %s451 = scalar_lea.vmem [#allocation2], %s450
        // Predicated region
        $region65: #{tpu_custom_call.1} parent=63 // pred_check
          %p452 = pneg %p55
        $region66: #{tpu_custom_call.1} parent=63 // pred_check_branch
          %454 = sbr.rel (%p452) target = $region68
        $region67: #{tpu_custom_call.1} parent=63 // pred_region
          %455 = dma.done %s448, 128
        $region68: #{tpu_custom_call.1} parent=63 // pred_fallthru
          _
        %s456 = sand.u32 %s34, 1
        %s457 = scalar_lea.sflag [#allocation6], %s456
        %s458 = sand.u32 %s68, 1
        %s459 = smul.addr %s458, 8
        %s460 = scalar_lea.vmem [#allocation5], %s459
        // Predicated region
        $region69: #{tpu_custom_call.1} parent=63 // pred_check
          %p461 = pneg %p81
        $region70: #{tpu_custom_call.1} parent=63 // pred_check_branch
          %463 = sbr.rel (%p461) target = $region72
        $region71: #{tpu_custom_call.1} parent=63 // pred_region
          %464 = dma.done %s457, 128
        $region72: #{tpu_custom_call.1} parent=63 // pred_fallthru
          _
        // Predicated region
        $region73: #{tpu_custom_call.1} parent=63 // pred_check
          %p465 = pneg %p128
        $region74: #{tpu_custom_call.1} parent=63 // pred_check_branch
          %467 = sbr.rel (%p465) target = $region76
        $region75: #{tpu_custom_call.1} parent=63 // pred_region
          %468 = dma.done [#allocation6], 512
        $region76: #{tpu_custom_call.1} parent=63 // pred_fallthru
          _
        // Predicated region
        $region77: #{tpu_custom_call.1} parent=63 // pred_check
          %p469 = pneg %p149
        $region78: #{tpu_custom_call.1} parent=63 // pred_check_branch
          %471 = sbr.rel (%p469) target = $region80
        $region79: #{tpu_custom_call.1} parent=63 // pred_region
          %472 = dma.done [#allocation9], 16
        $region80: #{tpu_custom_call.1} parent=63 // pred_fallthru
          _
        // Predicated region
        $region81: #{tpu_custom_call.1} parent=63 // pred_check
          %p473 = pneg %p170
        $region82: #{tpu_custom_call.1} parent=63 // pred_check_branch
          %475 = sbr.rel (%p473) target = $region84
        $region83: #{tpu_custom_call.1} parent=63 // pred_region
          %476 = dma.done [#allocation9], 512
        $region84: #{tpu_custom_call.1} parent=63 // pred_fallthru
          _
        // Predicated region
        $region85: #{tpu_custom_call.1} parent=63 // pred_check
          %p477 = pneg %p191
        $region86: #{tpu_custom_call.1} parent=63 // pred_check_branch
          %479 = sbr.rel (%p477) target = $region88
        $region87: #{tpu_custom_call.1} parent=63 // pred_region
          %480 = dma.done [#allocation12], 16
        $region88: #{tpu_custom_call.1} parent=63 // pred_fallthru
          _
        // Predicated region
        $region89: #{tpu_custom_call.1} parent=63 // pred_check
          %p481 = pneg %p212
        $region90: #{tpu_custom_call.1} parent=63 // pred_check_branch
          %483 = sbr.rel (%p481) target = $region92
        $region91: #{tpu_custom_call.1} parent=63 // pred_region
          %484 = dma.done [#allocation12], 512
        $region92: #{tpu_custom_call.1} parent=63 // pred_fallthru
          _
        // Predicated region
        $region93: #{tpu_custom_call.1} parent=63 // pred_check
          %p485 = pneg %p233
        $region94: #{tpu_custom_call.1} parent=63 // pred_check_branch
          %487 = sbr.rel (%p485) target = $region96
        $region95: #{tpu_custom_call.1} parent=63 // pred_region
          %488 = dma.done [#allocation15], 16
        $region96: #{tpu_custom_call.1} parent=63 // pred_fallthru
          _
        %s489 = sand.u32 %s42, 1
        %s490 = scalar_lea.sflag [#allocation3], %s489
        %s491 = sand.u32 %s42, 1
        %s492 = smul.addr %s491, 8
        %s493 = scalar_lea.vmem [#allocation2], %s492
        %p494 = pneg %p55
        %p495 = pneg %p52
        %s496 = sand.u32 %s34, 1
        %s497 = scalar_lea.sflag [#allocation6], %s496
        %s498 = sand.u32 %s68, 1
        %s499 = smul.addr %s498, 8
        %s500 = scalar_lea.vmem [#allocation5], %s499
        %p501 = pneg %p81
        %p502 = pneg %p78
        %p503 = scmp.lt.s32.totalorder %s34, 1
        %s504 = scalar_select %p503, %s34, 1
        %s505 = scalar_lea.vmem %s2, %s504
        %p506 = pneg %p107
        %p507 = pneg %p104
        %p508 = pneg %p128
        %p509 = pneg %p125
        %p510 = pneg %p149
        %p511 = pneg %p146
        %p512 = pneg %p170
        %p513 = pneg %p167
        %p514 = pneg %p191
        %p515 = pneg %p188
        %p516 = pneg %p212
        %p517 = pneg %p209
        %p518 = pneg %p233
        %p519 = pneg %p230
        %p520 = pneg %p254
        %p521 = pneg %p251
        %p522 = pneg %p275
        %p523 = pneg %p272
        %p524 = pneg %p301
        %p525 = pneg %p298
        %s526 = sand.u32 %s288, 1
        %s527 = scalar_lea.sflag [#allocation4], %s526
        %s528 = sand.u32 %s288, 1
        %s529 = smul.addr %s528, 8
        %s530 = scalar_lea.vmem [#allocation16], %s529
        %p531 = scmp.lt.s32.totalorder %s34, 1
        %s532 = scalar_select %p531, %s34, 1
        %s533 = scalar_lea.vmem %s2, %s532
        %v534 = vld [vmem:[%s451] sm:$0xff]
        %v535 = vld [vmem:[%s460] sm:$0xff]
        %v536 = vld [vmem:[#allocation7] sm:$0xff]
        %v537 = vld [vmem:[#allocation7 + $0x8] sm:$0xff]
        %v538 = vld [vmem:[#allocation7 + $0x10] sm:$0xff]
        %v539 = vld [vmem:[#allocation7 + $0x18] sm:$0xff]
        %v540 = vld [vmem:[#allocation8] sm:$0x1]
        %v542 = vlaneseq
        %v543 = vshrl.u32 %v542, 7
        %v544 = vsub.s32 0, %v543
        %v545 = vrot.slane %v540, %v544
        %vm547 = vcmask 261120
        %v549 = vsel %vm547, %v534, 0
        %551 = vmatprep.subr.mxu0 0.0
        %552 = vmatpush1.msra.mxu0 %v536
        %553 = vmatprep.subr.mxu0 0.0
        %554 = vmatpush1.msra.mxu0 %v537
        %555 = vmatprep.subr.mxu0 0.0
        %556 = vmatpush1.msra.mxu0 %v538
        %557 = vmatprep.subr.mxu0 0.0
        %558 = vmatpush1.msra.mxu0 %v539
        %559 = vmatprep.subr.mxu0 0.0
        %560 = vmatpush1.msra.mxu0 0.0
        %561 = vmatprep.subr.mxu0 0.0
        %562 = vmatpush1.msra.mxu0 0.0
        %563 = vmatprep.subr.mxu0 0.0
        %564 = vmatpush1.msra.mxu0 0.0
        %565 = vmatprep.subr.mxu0 0.0
        %566 = vmatpush1.msra.mxu0 0.0
        %567 = vmatprep.subr.mxu0 0.0
        %568 = vmatpush1.msra.mxu0 0.0
        %569 = vmatprep.subr.mxu0 0.0
        %570 = vmatpush1.msra.mxu0 0.0
        %571 = vmatprep.subr.mxu0 0.0
        %572 = vmatpush1.msra.mxu0 0.0
        %573 = vmatprep.subr.mxu0 0.0
        %574 = vmatpush1.msra.mxu0 0.0
        %575 = vmatprep.subr.mxu0 0.0
        %576 = vmatpush1.msra.mxu0 0.0
        %577 = vmatprep.subr.mxu0 0.0
        %578 = vmatpush1.msra.mxu0 0.0
        %579 = vmatprep.subr.mxu0 0.0
        %580 = vmatpush1.msra.mxu0 0.0
        %581 = vmatprep.subr.mxu0 0.0
        %582 = vmatpush1.msra.mxu0 0.0
        %583 = vmatprep.subr.mxu0 0.0
        %584 = vmatpush1.msra.mxu0 0.0
        %585 = vmatprep.subr.mxu0 0.0
        %586 = vmatpush1.msra.mxu0 0.0
        %587 = vmatprep.subr.mxu0 0.0
        %588 = vmatpush1.msra.mxu0 0.0
        %589 = vmatprep.subr.mxu0 0.0
        %590 = vmatpush1.msra.mxu0 0.0
        %591 = vmatprep.subr.mxu0 0.0
        %592 = vmatpush1.msra.mxu0 0.0
        %593 = vmatprep.subr.mxu0 0.0
        %594 = vmatpush1.msra.mxu0 0.0
        %595 = vmatprep.subr.mxu0 0.0
        %596 = vmatpush1.msra.mxu0 0.0
        %597 = vmatprep.subr.mxu0 0.0
        %598 = vmatpush1.msra.mxu0 0.0
        %599 = vmatprep.subr.mxu0 0.0
        %600 = vmatpush1.msra.mxu0 0.0
        %601 = vmatprep.subr.mxu0 0.0
        %602 = vmatpush1.msra.mxu0 0.0
        %603 = vmatprep.subr.mxu0 0.0
        %604 = vmatpush1.msra.mxu0 0.0
        %605 = vmatprep.subr.mxu0 0.0
        %606 = vmatpush1.msra.mxu0 0.0
        %607 = vmatprep.subr.mxu0 0.0
        %608 = vmatpush1.msra.mxu0 0.0
        %609 = vmatprep.subr.mxu0 0.0
        %610 = vmatpush1.msra.mxu0 0.0
        %611 = vmatprep.subr.mxu0 0.0
        %612 = vmatpush1.msra.mxu0 0.0
        %613 = vmatprep.subr.mxu0 0.0
        %614 = vmatpush1.msra.mxu0 0.0
        %615 = vmatprep.mubr.f32.mxu0 0.0
        %616 = vmatmul.mubr.f32.gmra.mrb[0].mxu0 %v549
        %v617 = vpop.f32.mrb[0].mxu0
        %v618 = vadd.f32 %v545, %v617
        %v619 = vpop.f32.mrb[0].mxu0
        %620 = vdwg.mxu0
        %v621 = vmul.f32 %v618, 0.35355338
        %v622 = vld [vmem:[#allocation10] sm:$0xff]
        %v623 = vld [vmem:[#allocation10 + $0x8] sm:$0xff]
        %v624 = vld [vmem:[#allocation10 + $0x10] sm:$0xff]
        %v625 = vld [vmem:[#allocation10 + $0x18] sm:$0xff]
        %v626 = vld [vmem:[#allocation11] sm:$0x1]
        %v628 = vlaneseq
        %v629 = vshrl.u32 %v628, 7
        %v630 = vsub.s32 0, %v629
        %v631 = vrot.slane %v626, %v630
        %v634 = vsel %vm547, %v535, 0
        %636 = vmatprep.subr.mxu0 0.0
        %637 = vmatpush1.msra.mxu0 %v622
        %638 = vmatprep.subr.mxu0 0.0
        %639 = vmatpush1.msra.mxu0 %v623
        %640 = vmatprep.subr.mxu0 0.0
        %641 = vmatpush1.msra.mxu0 %v624
        %642 = vmatprep.subr.mxu0 0.0
        %643 = vmatpush1.msra.mxu0 %v625
        %644 = vmatprep.subr.mxu0 0.0
        %645 = vmatpush1.msra.mxu0 0.0
        %646 = vmatprep.subr.mxu0 0.0
        %647 = vmatpush1.msra.mxu0 0.0
        %648 = vmatprep.subr.mxu0 0.0
        %649 = vmatpush1.msra.mxu0 0.0
        %650 = vmatprep.subr.mxu0 0.0
        %651 = vmatpush1.msra.mxu0 0.0
        %652 = vmatprep.subr.mxu0 0.0
        %653 = vmatpush1.msra.mxu0 0.0
        %654 = vmatprep.subr.mxu0 0.0
        %655 = vmatpush1.msra.mxu0 0.0
        %656 = vmatprep.subr.mxu0 0.0
        %657 = vmatpush1.msra.mxu0 0.0
        %658 = vmatprep.subr.mxu0 0.0
        %659 = vmatpush1.msra.mxu0 0.0
        %660 = vmatprep.subr.mxu0 0.0
        %661 = vmatpush1.msra.mxu0 0.0
        %662 = vmatprep.subr.mxu0 0.0
        %663 = vmatpush1.msra.mxu0 0.0
        %664 = vmatprep.subr.mxu0 0.0
        %665 = vmatpush1.msra.mxu0 0.0
        %666 = vmatprep.subr.mxu0 0.0
        %667 = vmatpush1.msra.mxu0 0.0
        %668 = vmatprep.subr.mxu0 0.0
        %669 = vmatpush1.msra.mxu0 0.0
        %670 = vmatprep.subr.mxu0 0.0
        %671 = vmatpush1.msra.mxu0 0.0
        %672 = vmatprep.subr.mxu0 0.0
        %673 = vmatpush1.msra.mxu0 0.0
        %674 = vmatprep.subr.mxu0 0.0
        %675 = vmatpush1.msra.mxu0 0.0
        %676 = vmatprep.subr.mxu0 0.0
        %677 = vmatpush1.msra.mxu0 0.0
        %678 = vmatprep.subr.mxu0 0.0
        %679 = vmatpush1.msra.mxu0 0.0
        %680 = vmatprep.subr.mxu0 0.0
        %681 = vmatpush1.msra.mxu0 0.0
        %682 = vmatprep.subr.mxu0 0.0
        %683 = vmatpush1.msra.mxu0 0.0
        %684 = vmatprep.subr.mxu0 0.0
        %685 = vmatpush1.msra.mxu0 0.0
        %686 = vmatprep.subr.mxu0 0.0
        %687 = vmatpush1.msra.mxu0 0.0
        %688 = vmatprep.subr.mxu0 0.0
        %689 = vmatpush1.msra.mxu0 0.0
        %690 = vmatprep.subr.mxu0 0.0
        %691 = vmatpush1.msra.mxu0 0.0
        %692 = vmatprep.subr.mxu0 0.0
        %693 = vmatpush1.msra.mxu0 0.0
        %694 = vmatprep.subr.mxu0 0.0
        %695 = vmatpush1.msra.mxu0 0.0
        %696 = vmatprep.subr.mxu0 0.0
        %697 = vmatpush1.msra.mxu0 0.0
        %698 = vmatprep.subr.mxu0 0.0
        %699 = vmatpush1.msra.mxu0 0.0
        %700 = vmatprep.mubr.f32.mxu0 0.0
        %701 = vmatmul.mubr.f32.gmra.mrb[0].mxu0 %v634
        %v702 = vpop.f32.mrb[0].mxu0
        %v703 = vadd.f32 %v631, %v702
        %v704 = vpop.f32.mrb[0].mxu0
        %705 = vdwg.mxu0
        %v706 = vld [vmem:[#allocation13] sm:$0xff]
        %v707 = vld [vmem:[#allocation13 + $0x8] sm:$0xff]
        %v708 = vld [vmem:[#allocation13 + $0x10] sm:$0xff]
        %v709 = vld [vmem:[#allocation13 + $0x18] sm:$0xff]
        %v710 = vld [vmem:[#allocation14] sm:$0x1]
        %v712 = vlaneseq
        %v713 = vshrl.u32 %v712, 7
        %v714 = vsub.s32 0, %v713
        %v715 = vrot.slane %v710, %v714
        %717 = vmatprep.subr.mxu0 0.0
        %718 = vmatpush1.msra.mxu0 %v706
        %719 = vmatprep.subr.mxu0 0.0
        %720 = vmatpush1.msra.mxu0 %v707
        %721 = vmatprep.subr.mxu0 0.0
        %722 = vmatpush1.msra.mxu0 %v708
        %723 = vmatprep.subr.mxu0 0.0
        %724 = vmatpush1.msra.mxu0 %v709
        %725 = vmatprep.subr.mxu0 0.0
        %726 = vmatpush1.msra.mxu0 0.0
        %727 = vmatprep.subr.mxu0 0.0
        %728 = vmatpush1.msra.mxu0 0.0
        %729 = vmatprep.subr.mxu0 0.0
        %730 = vmatpush1.msra.mxu0 0.0
        %731 = vmatprep.subr.mxu0 0.0
        %732 = vmatpush1.msra.mxu0 0.0
        %733 = vmatprep.subr.mxu0 0.0
        %734 = vmatpush1.msra.mxu0 0.0
        %735 = vmatprep.subr.mxu0 0.0
        %736 = vmatpush1.msra.mxu0 0.0
        %737 = vmatprep.subr.mxu0 0.0
        %738 = vmatpush1.msra.mxu0 0.0
        %739 = vmatprep.subr.mxu0 0.0
        %740 = vmatpush1.msra.mxu0 0.0
        %741 = vmatprep.subr.mxu0 0.0
        %742 = vmatpush1.msra.mxu0 0.0
        %743 = vmatprep.subr.mxu0 0.0
        %744 = vmatpush1.msra.mxu0 0.0
        %745 = vmatprep.subr.mxu0 0.0
        %746 = vmatpush1.msra.mxu0 0.0
        %747 = vmatprep.subr.mxu0 0.0
        %748 = vmatpush1.msra.mxu0 0.0
        %749 = vmatprep.subr.mxu0 0.0
        %750 = vmatpush1.msra.mxu0 0.0
        %751 = vmatprep.subr.mxu0 0.0
        %752 = vmatpush1.msra.mxu0 0.0
        %753 = vmatprep.subr.mxu0 0.0
        %754 = vmatpush1.msra.mxu0 0.0
        %755 = vmatprep.subr.mxu0 0.0
        %756 = vmatpush1.msra.mxu0 0.0
        %757 = vmatprep.subr.mxu0 0.0
        %758 = vmatpush1.msra.mxu0 0.0
        %759 = vmatprep.subr.mxu0 0.0
        %760 = vmatpush1.msra.mxu0 0.0
        %761 = vmatprep.subr.mxu0 0.0
        %762 = vmatpush1.msra.mxu0 0.0
        %763 = vmatprep.subr.mxu0 0.0
        %764 = vmatpush1.msra.mxu0 0.0
        %765 = vmatprep.subr.mxu0 0.0
        %766 = vmatpush1.msra.mxu0 0.0
        %767 = vmatprep.subr.mxu0 0.0
        %768 = vmatpush1.msra.mxu0 0.0
        %769 = vmatprep.subr.mxu0 0.0
        %770 = vmatpush1.msra.mxu0 0.0
        %771 = vmatprep.subr.mxu0 0.0
        %772 = vmatpush1.msra.mxu0 0.0
        %773 = vmatprep.subr.mxu0 0.0
        %774 = vmatpush1.msra.mxu0 0.0
        %775 = vmatprep.subr.mxu0 0.0
        %776 = vmatpush1.msra.mxu0 0.0
        %777 = vmatprep.subr.mxu0 0.0
        %778 = vmatpush1.msra.mxu0 0.0
        %779 = vmatprep.subr.mxu0 0.0
        %780 = vmatpush1.msra.mxu0 0.0
        %781 = vmatprep.mubr.f32.mxu0 0.0
        %782 = vmatmul.mubr.f32.gmra.mrb[0].mxu0 %v634
        %v783 = vpop.f32.mrb[0].mxu0
        %v784 = vadd.f32 %v715, %v783
        %v785 = vpop.f32.mrb[0].mxu0
        %786 = vdwg.mxu0
        %v787 = vld [vmem:[%s533] sm:$0x1]
        %vm788 = vcmp.eq.s32.totalorder %v787, 0
        %v789 = vsel %vm788, -1e+30, 0.0
        %v791 = vlaneseq
        %v792 = vshrl.u32 %v791, 7
        %v793 = vsub.s32 0, %v792
        %v794 = vrot.slane %v789, %v793
        %vm796 = vcmask 64512
        %v798 = vsel %vm796, %v621, 0
        %v801 = vsel %vm796, %v703, 0
        %803 = vmatprep.subr.mxu0 0.0
        %804 = vmatpush1.xpose.msra.mxu0 %v801
        %805 = vmatprep.subr.mxu0 0.0
        %806 = vmatpush1.xpose.msra.mxu0 0.0
        %807 = vmatprep.subr.mxu0 0.0
        %808 = vmatpush1.xpose.msra.mxu0 0.0
        %809 = vmatprep.subr.mxu0 0.0
        %810 = vmatpush1.xpose.msra.mxu0 0.0
        %811 = vmatprep.subr.mxu0 0.0
        %812 = vmatpush1.xpose.msra.mxu0 0.0
        %813 = vmatprep.subr.mxu0 0.0
        %814 = vmatpush1.xpose.msra.mxu0 0.0
        %815 = vmatprep.subr.mxu0 0.0
        %816 = vmatpush1.xpose.msra.mxu0 0.0
        %817 = vmatprep.subr.mxu0 0.0
        %818 = vmatpush1.xpose.msra.mxu0 0.0
        %819 = vmatprep.subr.mxu0 0.0
        %820 = vmatpush1.xpose.msra.mxu0 0.0
        %821 = vmatprep.subr.mxu0 0.0
        %822 = vmatpush1.xpose.msra.mxu0 0.0
        %823 = vmatprep.subr.mxu0 0.0
        %824 = vmatpush1.xpose.msra.mxu0 0.0
        %825 = vmatprep.subr.mxu0 0.0
        %826 = vmatpush1.xpose.msra.mxu0 0.0
        %827 = vmatprep.subr.mxu0 0.0
        %828 = vmatpush1.xpose.msra.mxu0 0.0
        %829 = vmatprep.subr.mxu0 0.0
        %830 = vmatpush1.xpose.msra.mxu0 0.0
        %831 = vmatprep.subr.mxu0 0.0
        %832 = vmatpush1.xpose.msra.mxu0 0.0
        %833 = vmatprep.subr.mxu0 0.0
        %834 = vmatpush1.xpose.msra.mxu0 0.0
        %835 = vmatprep.subr.mxu0 0.0
        %836 = vmatpush1.xpose.msra.mxu0 0.0
        %837 = vmatprep.subr.mxu0 0.0
        %838 = vmatpush1.xpose.msra.mxu0 0.0
        %839 = vmatprep.subr.mxu0 0.0
        %840 = vmatpush1.xpose.msra.mxu0 0.0
        %841 = vmatprep.subr.mxu0 0.0
        %842 = vmatpush1.xpose.msra.mxu0 0.0
        %843 = vmatprep.subr.mxu0 0.0
        %844 = vmatpush1.xpose.msra.mxu0 0.0
        %845 = vmatprep.subr.mxu0 0.0
        %846 = vmatpush1.xpose.msra.mxu0 0.0
        %847 = vmatprep.subr.mxu0 0.0
        %848 = vmatpush1.xpose.msra.mxu0 0.0
        %849 = vmatprep.subr.mxu0 0.0
        %850 = vmatpush1.xpose.msra.mxu0 0.0
        %851 = vmatprep.subr.mxu0 0.0
        %852 = vmatpush1.xpose.msra.mxu0 0.0
        %853 = vmatprep.subr.mxu0 0.0
        %854 = vmatpush1.xpose.msra.mxu0 0.0
        %855 = vmatprep.subr.mxu0 0.0
        %856 = vmatpush1.xpose.msra.mxu0 0.0
        %857 = vmatprep.subr.mxu0 0.0
        %858 = vmatpush1.xpose.msra.mxu0 0.0
        %859 = vmatprep.subr.mxu0 0.0
        %860 = vmatpush1.xpose.msra.mxu0 0.0
        %861 = vmatprep.subr.mxu0 0.0
        %862 = vmatpush1.xpose.msra.mxu0 0.0
        %863 = vmatprep.subr.mxu0 0.0
        %864 = vmatpush1.xpose.msra.mxu0 0.0
        %865 = vmatprep.subr.mxu0 0.0
        %866 = vmatpush1.xpose.msra.mxu0 0.0
        %867 = vmatprep.mubr.f32.mxu0 0.0
        %868 = vmatmul.mubr.f32.gmra.mrb[0].mxu0 %v798
        %v869 = vpop.f32.mrb[0].mxu0
        %v870 = vadd.f32 %v794, %v869
        %v871 = vpop.f32.mrb[0].mxu0
        %872 = vdwg.mxu0
        %v873 = vsel %vm796, %v870, -inf
        %874 = vmax.xlane.f32.xlu0 %v873
        %v875 = vpop.xlane.xlu0 %874
        %v876 = vsub.f32 %v870, %v875
        %v877 = vmul.f32 %v876, 1.442695
        %v878 = vpow.pop %v877
        %v879 = vsel %vm796, %v878, 0.0
        %880 = vadd.xlane.f32.xlu0 %v879
        %v881 = vpop.xlane.xlu0 %880
        %v882 = vrcp.pop %v881
        %v883 = vmul.f32 %v878, %v882
        %v885 = vsel %vm796, %v883, 0
        %887 = vmatprep.subr.mxu0 0.0
        %888 = vmatpush1.msra.mxu0 %v784
        %889 = vmatprep.subr.mxu0 0.0
        %890 = vmatpush1.msra.mxu0 0.0
        %891 = vmatprep.subr.mxu0 0.0
        %892 = vmatpush1.msra.mxu0 0.0
        %893 = vmatprep.subr.mxu0 0.0
        %894 = vmatpush1.msra.mxu0 0.0
        %895 = vmatprep.subr.mxu0 0.0
        %896 = vmatpush1.msra.mxu0 0.0
        %897 = vmatprep.subr.mxu0 0.0
        %898 = vmatpush1.msra.mxu0 0.0
        %899 = vmatprep.subr.mxu0 0.0
        %900 = vmatpush1.msra.mxu0 0.0
        %901 = vmatprep.subr.mxu0 0.0
        %902 = vmatpush1.msra.mxu0 0.0
        %903 = vmatprep.subr.mxu0 0.0
        %904 = vmatpush1.msra.mxu0 0.0
        %905 = vmatprep.subr.mxu0 0.0
        %906 = vmatpush1.msra.mxu0 0.0
        %907 = vmatprep.subr.mxu0 0.0
        %908 = vmatpush1.msra.mxu0 0.0
        %909 = vmatprep.subr.mxu0 0.0
        %910 = vmatpush1.msra.mxu0 0.0
        %911 = vmatprep.subr.mxu0 0.0
        %912 = vmatpush1.msra.mxu0 0.0
        %913 = vmatprep.subr.mxu0 0.0
        %914 = vmatpush1.msra.mxu0 0.0
        %915 = vmatprep.subr.mxu0 0.0
        %916 = vmatpush1.msra.mxu0 0.0
        %917 = vmatprep.subr.mxu0 0.0
        %918 = vmatpush1.msra.mxu0 0.0
        %919 = vmatprep.subr.mxu0 0.0
        %920 = vmatpush1.msra.mxu0 0.0
        %921 = vmatprep.subr.mxu0 0.0
        %922 = vmatpush1.msra.mxu0 0.0
        %923 = vmatprep.subr.mxu0 0.0
        %924 = vmatpush1.msra.mxu0 0.0
        %925 = vmatprep.subr.mxu0 0.0
        %926 = vmatpush1.msra.mxu0 0.0
        %927 = vmatprep.subr.mxu0 0.0
        %928 = vmatpush1.msra.mxu0 0.0
        %929 = vmatprep.subr.mxu0 0.0
        %930 = vmatpush1.msra.mxu0 0.0
        %931 = vmatprep.subr.mxu0 0.0
        %932 = vmatpush1.msra.mxu0 0.0
        %933 = vmatprep.subr.mxu0 0.0
        %934 = vmatpush1.msra.mxu0 0.0
        %935 = vmatprep.subr.mxu0 0.0
        %936 = vmatpush1.msra.mxu0 0.0
        %937 = vmatprep.subr.mxu0 0.0
        %938 = vmatpush1.msra.mxu0 0.0
        %939 = vmatprep.subr.mxu0 0.0
        %940 = vmatpush1.msra.mxu0 0.0
        %941 = vmatprep.subr.mxu0 0.0
        %942 = vmatpush1.msra.mxu0 0.0
        %943 = vmatprep.subr.mxu0 0.0
        %944 = vmatpush1.msra.mxu0 0.0
        %945 = vmatprep.subr.mxu0 0.0
        %946 = vmatpush1.msra.mxu0 0.0
        %947 = vmatprep.subr.mxu0 0.0
        %948 = vmatpush1.msra.mxu0 0.0
        %949 = vmatprep.subr.mxu0 0.0
        %950 = vmatpush1.msra.mxu0 0.0
        %951 = vmatprep.mubr.f32.mxu0 0.0
        %952 = vmatmul.mubr.f32.gmra.mrb[0].mxu0 %v885
        %v953 = vpop.f32.mrb[0].mxu0
        %v954 = vadd.f32 0.0, %v953
        %v955 = vpop.f32.mrb[0].mxu0
        %956 = vdwg.mxu0
        %v957 = vld [vmem:[%s9] sm:$0xff]
        %958 = vrot.lane.b32.xlu0 %v621, 120
        %v959 = vpop.permute.xlu0 %958
        %960 = vrot.lane.b32.xlu0 %v703, 120
        %v961 = vpop.permute.xlu0 %960
        %v962 = vsel %vm796, %v959, 0
        %v964 = vsel %vm796, %v961, 0
        %966 = vmatprep.subr.mxu0 0.0
        %967 = vmatpush1.xpose.msra.mxu0 %v964
        %968 = vmatprep.subr.mxu0 0.0
        %969 = vmatpush1.xpose.msra.mxu0 0.0
        %970 = vmatprep.subr.mxu0 0.0
        %971 = vmatpush1.xpose.msra.mxu0 0.0
        %972 = vmatprep.subr.mxu0 0.0
        %973 = vmatpush1.xpose.msra.mxu0 0.0
        %974 = vmatprep.subr.mxu0 0.0
        %975 = vmatpush1.xpose.msra.mxu0 0.0
        %976 = vmatprep.subr.mxu0 0.0
        %977 = vmatpush1.xpose.msra.mxu0 0.0
        %978 = vmatprep.subr.mxu0 0.0
        %979 = vmatpush1.xpose.msra.mxu0 0.0
        %980 = vmatprep.subr.mxu0 0.0
        %981 = vmatpush1.xpose.msra.mxu0 0.0
        %982 = vmatprep.subr.mxu0 0.0
        %983 = vmatpush1.xpose.msra.mxu0 0.0
        %984 = vmatprep.subr.mxu0 0.0
        %985 = vmatpush1.xpose.msra.mxu0 0.0
        %986 = vmatprep.subr.mxu0 0.0
        %987 = vmatpush1.xpose.msra.mxu0 0.0
        %988 = vmatprep.subr.mxu0 0.0
        %989 = vmatpush1.xpose.msra.mxu0 0.0
        %990 = vmatprep.subr.mxu0 0.0
        %991 = vmatpush1.xpose.msra.mxu0 0.0
        %992 = vmatprep.subr.mxu0 0.0
        %993 = vmatpush1.xpose.msra.mxu0 0.0
        %994 = vmatprep.subr.mxu0 0.0
        %995 = vmatpush1.xpose.msra.mxu0 0.0
        %996 = vmatprep.subr.mxu0 0.0
        %997 = vmatpush1.xpose.msra.mxu0 0.0
        %998 = vmatprep.subr.mxu0 0.0
        %999 = vmatpush1.xpose.msra.mxu0 0.0
        %1000 = vmatprep.subr.mxu0 0.0
        %1001 = vmatpush1.xpose.msra.mxu0 0.0
        %1002 = vmatprep.subr.mxu0 0.0
        %1003 = vmatpush1.xpose.msra.mxu0 0.0
        %1004 = vmatprep.subr.mxu0 0.0
        %1005 = vmatpush1.xpose.msra.mxu0 0.0
        %1006 = vmatprep.subr.mxu0 0.0
        %1007 = vmatpush1.xpose.msra.mxu0 0.0
        %1008 = vmatprep.subr.mxu0 0.0
        %1009 = vmatpush1.xpose.msra.mxu0 0.0
        %1010 = vmatprep.subr.mxu0 0.0
        %1011 = vmatpush1.xpose.msra.mxu0 0.0
        %1012 = vmatprep.subr.mxu0 0.0
        %1013 = vmatpush1.xpose.msra.mxu0 0.0
        %1014 = vmatprep.subr.mxu0 0.0
        %1015 = vmatpush1.xpose.msra.mxu0 0.0
        %1016 = vmatprep.subr.mxu0 0.0
        %1017 = vmatpush1.xpose.msra.mxu0 0.0
        %1018 = vmatprep.subr.mxu0 0.0
        %1019 = vmatpush1.xpose.msra.mxu0 0.0
        %1020 = vmatprep.subr.mxu0 0.0
        %1021 = vmatpush1.xpose.msra.mxu0 0.0
        %1022 = vmatprep.subr.mxu0 0.0
        %1023 = vmatpush1.xpose.msra.mxu0 0.0
        %1024 = vmatprep.subr.mxu0 0.0
        %1025 = vmatpush1.xpose.msra.mxu0 0.0
        %1026 = vmatprep.subr.mxu0 0.0
        %1027 = vmatpush1.xpose.msra.mxu0 0.0
        %1028 = vmatprep.subr.mxu0 0.0
        %1029 = vmatpush1.xpose.msra.mxu0 0.0
        %1030 = vmatprep.mubr.f32.mxu0 0.0
        %1031 = vmatmul.mubr.f32.gmra.mrb[0].mxu0 %v962
        %v1032 = vpop.f32.mrb[0].mxu0
        %v1033 = vadd.f32 %v794, %v1032
        %v1034 = vpop.f32.mrb[0].mxu0
        %1035 = vdwg.mxu0
        %v1036 = vsel %vm796, %v1033, -inf
        %1037 = vmax.xlane.f32.xlu0 %v1036
        %v1038 = vpop.xlane.xlu0 %1037
        %v1039 = vsub.f32 %v1033, %v1038
        %v1040 = vmul.f32 %v1039, 1.442695
        %v1041 = vpow.pop %v1040
        %v1042 = vsel %vm796, %v1041, 0.0
        %1043 = vadd.xlane.f32.xlu0 %v1042
        %v1044 = vpop.xlane.xlu0 %1043
        %v1045 = vrcp.pop %v1044
        %v1046 = vmul.f32 %v1041, %v1045
        %1048 = vrot.lane.b32.xlu0 %v784, 120
        %v1049 = vpop.permute.xlu0 %1048
        %v1052 = vsel %vm796, %v1046, 0
        %1054 = vmatprep.subr.mxu0 0.0
        %1055 = vmatpush1.msra.mxu0 %v1049
        %1056 = vmatprep.subr.mxu0 0.0
        %1057 = vmatpush1.msra.mxu0 0.0
        %1058 = vmatprep.subr.mxu0 0.0
        %1059 = vmatpush1.msra.mxu0 0.0
        %1060 = vmatprep.subr.mxu0 0.0
        %1061 = vmatpush1.msra.mxu0 0.0
        %1062 = vmatprep.subr.mxu0 0.0
        %1063 = vmatpush1.msra.mxu0 0.0
        %1064 = vmatprep.subr.mxu0 0.0
        %1065 = vmatpush1.msra.mxu0 0.0
        %1066 = vmatprep.subr.mxu0 0.0
        %1067 = vmatpush1.msra.mxu0 0.0
        %1068 = vmatprep.subr.mxu0 0.0
        %1069 = vmatpush1.msra.mxu0 0.0
        %1070 = vmatprep.subr.mxu0 0.0
        %1071 = vmatpush1.msra.mxu0 0.0
        %1072 = vmatprep.subr.mxu0 0.0
        %1073 = vmatpush1.msra.mxu0 0.0
        %1074 = vmatprep.subr.mxu0 0.0
        %1075 = vmatpush1.msra.mxu0 0.0
        %1076 = vmatprep.subr.mxu0 0.0
        %1077 = vmatpush1.msra.mxu0 0.0
        %1078 = vmatprep.subr.mxu0 0.0
        %1079 = vmatpush1.msra.mxu0 0.0
        %1080 = vmatprep.subr.mxu0 0.0
        %1081 = vmatpush1.msra.mxu0 0.0
        %1082 = vmatprep.subr.mxu0 0.0
        %1083 = vmatpush1.msra.mxu0 0.0
        %1084 = vmatprep.subr.mxu0 0.0
        %1085 = vmatpush1.msra.mxu0 0.0
        %1086 = vmatprep.subr.mxu0 0.0
        %1087 = vmatpush1.msra.mxu0 0.0
        %1088 = vmatprep.subr.mxu0 0.0
        %1089 = vmatpush1.msra.mxu0 0.0
        %1090 = vmatprep.subr.mxu0 0.0
        %1091 = vmatpush1.msra.mxu0 0.0
        %1092 = vmatprep.subr.mxu0 0.0
        %1093 = vmatpush1.msra.mxu0 0.0
        %1094 = vmatprep.subr.mxu0 0.0
        %1095 = vmatpush1.msra.mxu0 0.0
        %1096 = vmatprep.subr.mxu0 0.0
        %1097 = vmatpush1.msra.mxu0 0.0
        %1098 = vmatprep.subr.mxu0 0.0
        %1099 = vmatpush1.msra.mxu0 0.0
        %1100 = vmatprep.subr.mxu0 0.0
        %1101 = vmatpush1.msra.mxu0 0.0
        %1102 = vmatprep.subr.mxu0 0.0
        %1103 = vmatpush1.msra.mxu0 0.0
        %1104 = vmatprep.subr.mxu0 0.0
        %1105 = vmatpush1.msra.mxu0 0.0
        %1106 = vmatprep.subr.mxu0 0.0
        %1107 = vmatpush1.msra.mxu0 0.0
        %1108 = vmatprep.subr.mxu0 0.0
        %1109 = vmatpush1.msra.mxu0 0.0
        %1110 = vmatprep.subr.mxu0 0.0
        %1111 = vmatpush1.msra.mxu0 0.0
        %1112 = vmatprep.subr.mxu0 0.0
        %1113 = vmatpush1.msra.mxu0 0.0
        %1114 = vmatprep.subr.mxu0 0.0
        %1115 = vmatpush1.msra.mxu0 0.0
        %1116 = vmatprep.subr.mxu0 0.0
        %1117 = vmatpush1.msra.mxu0 0.0
        %1118 = vmatprep.mubr.f32.mxu0 0.0
        %1119 = vmatmul.mubr.f32.gmra.mrb[0].mxu0 %v1052
        %v1120 = vpop.f32.mrb[0].mxu0
        %v1121 = vadd.f32 0.0, %v1120
        %v1122 = vpop.f32.mrb[0].mxu0
        %1123 = vdwg.mxu0
        %v1124 = vld [vmem:[%s9 + $0x8] sm:$0xff]
        %v1126 = vsel %vm796, %v1121, 0
        %1128 = vmatprep.subr.mxu0 0.0
        %1129 = vmatpush1.msra.mxu0 %v1124
        %1130 = vmatprep.subr.mxu0 0.0
        %1131 = vmatpush1.msra.mxu0 0.0
        %1132 = vmatprep.subr.mxu0 0.0
        %1133 = vmatpush1.msra.mxu0 0.0
        %1134 = vmatprep.subr.mxu0 0.0
        %1135 = vmatpush1.msra.mxu0 0.0
        %1136 = vmatprep.subr.mxu0 0.0
        %1137 = vmatpush1.msra.mxu0 0.0
        %1138 = vmatprep.subr.mxu0 0.0
        %1139 = vmatpush1.msra.mxu0 0.0
        %1140 = vmatprep.subr.mxu0 0.0
        %1141 = vmatpush1.msra.mxu0 0.0
        %1142 = vmatprep.subr.mxu0 0.0
        %1143 = vmatpush1.msra.mxu0 0.0
        %1144 = vmatprep.subr.mxu0 0.0
        %1145 = vmatpush1.msra.mxu0 0.0
        %1146 = vmatprep.subr.mxu0 0.0
        %1147 = vmatpush1.msra.mxu0 0.0
        %1148 = vmatprep.subr.mxu0 0.0
        %1149 = vmatpush1.msra.mxu0 0.0
        %1150 = vmatprep.subr.mxu0 0.0
        %1151 = vmatpush1.msra.mxu0 0.0
        %1152 = vmatprep.subr.mxu0 0.0
        %1153 = vmatpush1.msra.mxu0 0.0
        %1154 = vmatprep.subr.mxu0 0.0
        %1155 = vmatpush1.msra.mxu0 0.0
        %1156 = vmatprep.subr.mxu0 0.0
        %1157 = vmatpush1.msra.mxu0 0.0
        %1158 = vmatprep.subr.mxu0 0.0
        %1159 = vmatpush1.msra.mxu0 0.0
        %1160 = vmatprep.subr.mxu0 0.0
        %1161 = vmatpush1.msra.mxu0 0.0
        %1162 = vmatprep.subr.mxu0 0.0
        %1163 = vmatpush1.msra.mxu0 0.0
        %1164 = vmatprep.subr.mxu0 0.0
        %1165 = vmatpush1.msra.mxu0 0.0
        %1166 = vmatprep.subr.mxu0 0.0
        %1167 = vmatpush1.msra.mxu0 0.0
        %1168 = vmatprep.subr.mxu0 0.0
        %1169 = vmatpush1.msra.mxu0 0.0
        %1170 = vmatprep.subr.mxu0 0.0
        %1171 = vmatpush1.msra.mxu0 0.0
        %1172 = vmatprep.subr.mxu0 0.0
        %1173 = vmatpush1.msra.mxu0 0.0
        %1174 = vmatprep.subr.mxu0 0.0
        %1175 = vmatpush1.msra.mxu0 0.0
        %1176 = vmatprep.subr.mxu0 0.0
        %1177 = vmatpush1.msra.mxu0 0.0
        %1178 = vmatprep.subr.mxu0 0.0
        %1179 = vmatpush1.msra.mxu0 0.0
        %1180 = vmatprep.subr.mxu0 0.0
        %1181 = vmatpush1.msra.mxu0 0.0
        %1182 = vmatprep.subr.mxu0 0.0
        %1183 = vmatpush1.msra.mxu0 0.0
        %1184 = vmatprep.subr.mxu0 0.0
        %1185 = vmatpush1.msra.mxu0 0.0
        %1186 = vmatprep.subr.mxu0 0.0
        %1187 = vmatpush1.msra.mxu0 0.0
        %1188 = vmatprep.subr.mxu0 0.0
        %1189 = vmatpush1.msra.mxu0 0.0
        %1190 = vmatprep.subr.mxu0 0.0
        %1191 = vmatpush1.msra.mxu0 0.0
        %1192 = vmatprep.mubr.f32.mxu0 0.0
        %1193 = vmatmul.mubr.f32.gmra.mrb[0].mxu0 %v1126
        %v1194 = vpop.f32.mrb[0].mxu0
        %v1195 = vadd.f32 0.0, %v1194
        %v1196 = vpop.f32.mrb[0].mxu0
        %1197 = vdwg.mxu0
        %v1199 = vsel %vm796, %v954, 0
        %1201 = vmatprep.subr.mxu0 0.0
        %1202 = vmatpush1.msra.mxu0 %v957
        %1203 = vmatprep.subr.mxu0 0.0
        %1204 = vmatpush1.msra.mxu0 0.0
        %1205 = vmatprep.subr.mxu0 0.0
        %1206 = vmatpush1.msra.mxu0 0.0
        %1207 = vmatprep.subr.mxu0 0.0
        %1208 = vmatpush1.msra.mxu0 0.0
        %1209 = vmatprep.subr.mxu0 0.0
        %1210 = vmatpush1.msra.mxu0 0.0
        %1211 = vmatprep.subr.mxu0 0.0
        %1212 = vmatpush1.msra.mxu0 0.0
        %1213 = vmatprep.subr.mxu0 0.0
        %1214 = vmatpush1.msra.mxu0 0.0
        %1215 = vmatprep.subr.mxu0 0.0
        %1216 = vmatpush1.msra.mxu0 0.0
        %1217 = vmatprep.subr.mxu0 0.0
        %1218 = vmatpush1.msra.mxu0 0.0
        %1219 = vmatprep.subr.mxu0 0.0
        %1220 = vmatpush1.msra.mxu0 0.0
        %1221 = vmatprep.subr.mxu0 0.0
        %1222 = vmatpush1.msra.mxu0 0.0
        %1223 = vmatprep.subr.mxu0 0.0
        %1224 = vmatpush1.msra.mxu0 0.0
        %1225 = vmatprep.subr.mxu0 0.0
        %1226 = vmatpush1.msra.mxu0 0.0
        %1227 = vmatprep.subr.mxu0 0.0
        %1228 = vmatpush1.msra.mxu0 0.0
        %1229 = vmatprep.subr.mxu0 0.0
        %1230 = vmatpush1.msra.mxu0 0.0
        %1231 = vmatprep.subr.mxu0 0.0
        %1232 = vmatpush1.msra.mxu0 0.0
        %1233 = vmatprep.subr.mxu0 0.0
        %1234 = vmatpush1.msra.mxu0 0.0
        %1235 = vmatprep.subr.mxu0 0.0
        %1236 = vmatpush1.msra.mxu0 0.0
        %1237 = vmatprep.subr.mxu0 0.0
        %1238 = vmatpush1.msra.mxu0 0.0
        %1239 = vmatprep.subr.mxu0 0.0
        %1240 = vmatpush1.msra.mxu0 0.0
        %1241 = vmatprep.subr.mxu0 0.0
        %1242 = vmatpush1.msra.mxu0 0.0
        %1243 = vmatprep.subr.mxu0 0.0
        %1244 = vmatpush1.msra.mxu0 0.0
        %1245 = vmatprep.subr.mxu0 0.0
        %1246 = vmatpush1.msra.mxu0 0.0
        %1247 = vmatprep.subr.mxu0 0.0
        %1248 = vmatpush1.msra.mxu0 0.0
        %1249 = vmatprep.subr.mxu0 0.0
        %1250 = vmatpush1.msra.mxu0 0.0
        %1251 = vmatprep.subr.mxu0 0.0
        %1252 = vmatpush1.msra.mxu0 0.0
        %1253 = vmatprep.subr.mxu0 0.0
        %1254 = vmatpush1.msra.mxu0 0.0
        %1255 = vmatprep.subr.mxu0 0.0
        %1256 = vmatpush1.msra.mxu0 0.0
        %1257 = vmatprep.subr.mxu0 0.0
        %1258 = vmatpush1.msra.mxu0 0.0
        %1259 = vmatprep.subr.mxu0 0.0
        %1260 = vmatpush1.msra.mxu0 0.0
        %1261 = vmatprep.subr.mxu0 0.0
        %1262 = vmatpush1.msra.mxu0 0.0
        %1263 = vmatprep.subr.mxu0 0.0
        %1264 = vmatpush1.msra.mxu0 0.0
        %1265 = vmatprep.mubr.f32.mxu0 0.0
        %1266 = vmatmul.mubr.f32.gmra.mrb[0].mxu0 %v1199
        %v1267 = vpop.f32.mrb[0].mxu0
        %v1268 = vadd.f32 %v1195, %v1267
        %v1269 = vpop.f32.mrb[0].mxu0
        %1270 = vdwg.mxu0
        %1271 = vrot.lane.b32.xlu0 %v621, 112
        %v1272 = vpop.permute.xlu0 %1271
        %1273 = vrot.lane.b32.xlu0 %v703, 112
        %v1274 = vpop.permute.xlu0 %1273
        %v1275 = vsel %vm796, %v1272, 0
        %v1277 = vsel %vm796, %v1274, 0
        %1279 = vmatprep.subr.mxu0 0.0
        %1280 = vmatpush1.xpose.msra.mxu0 %v1277
        %1281 = vmatprep.subr.mxu0 0.0
        %1282 = vmatpush1.xpose.msra.mxu0 0.0
        %1283 = vmatprep.subr.mxu0 0.0
        %1284 = vmatpush1.xpose.msra.mxu0 0.0
        %1285 = vmatprep.subr.mxu0 0.0
        %1286 = vmatpush1.xpose.msra.mxu0 0.0
        %1287 = vmatprep.subr.mxu0 0.0
        %1288 = vmatpush1.xpose.msra.mxu0 0.0
        %1289 = vmatprep.subr.mxu0 0.0
        %1290 = vmatpush1.xpose.msra.mxu0 0.0
        %1291 = vmatprep.subr.mxu0 0.0
        %1292 = vmatpush1.xpose.msra.mxu0 0.0
        %1293 = vmatprep.subr.mxu0 0.0
        %1294 = vmatpush1.xpose.msra.mxu0 0.0
        %1295 = vmatprep.subr.mxu0 0.0
        %1296 = vmatpush1.xpose.msra.mxu0 0.0
        %1297 = vmatprep.subr.mxu0 0.0
        %1298 = vmatpush1.xpose.msra.mxu0 0.0
        %1299 = vmatprep.subr.mxu0 0.0
        %1300 = vmatpush1.xpose.msra.mxu0 0.0
        %1301 = vmatprep.subr.mxu0 0.0
        %1302 = vmatpush1.xpose.msra.mxu0 0.0
        %1303 = vmatprep.subr.mxu0 0.0
        %1304 = vmatpush1.xpose.msra.mxu0 0.0
        %1305 = vmatprep.subr.mxu0 0.0
        %1306 = vmatpush1.xpose.msra.mxu0 0.0
        %1307 = vmatprep.subr.mxu0 0.0
        %1308 = vmatpush1.xpose.msra.mxu0 0.0
        %1309 = vmatprep.subr.mxu0 0.0
        %1310 = vmatpush1.xpose.msra.mxu0 0.0
        %1311 = vmatprep.subr.mxu0 0.0
        %1312 = vmatpush1.xpose.msra.mxu0 0.0
        %1313 = vmatprep.subr.mxu0 0.0
        %1314 = vmatpush1.xpose.msra.mxu0 0.0
        %1315 = vmatprep.subr.mxu0 0.0
        %1316 = vmatpush1.xpose.msra.mxu0 0.0
        %1317 = vmatprep.subr.mxu0 0.0
        %1318 = vmatpush1.xpose.msra.mxu0 0.0
        %1319 = vmatprep.subr.mxu0 0.0
        %1320 = vmatpush1.xpose.msra.mxu0 0.0
        %1321 = vmatprep.subr.mxu0 0.0
        %1322 = vmatpush1.xpose.msra.mxu0 0.0
        %1323 = vmatprep.subr.mxu0 0.0
        %1324 = vmatpush1.xpose.msra.mxu0 0.0
        %1325 = vmatprep.subr.mxu0 0.0
        %1326 = vmatpush1.xpose.msra.mxu0 0.0
        %1327 = vmatprep.subr.mxu0 0.0
        %1328 = vmatpush1.xpose.msra.mxu0 0.0
        %1329 = vmatprep.subr.mxu0 0.0
        %1330 = vmatpush1.xpose.msra.mxu0 0.0
        %1331 = vmatprep.subr.mxu0 0.0
        %1332 = vmatpush1.xpose.msra.mxu0 0.0
        %1333 = vmatprep.subr.mxu0 0.0
        %1334 = vmatpush1.xpose.msra.mxu0 0.0
        %1335 = vmatprep.subr.mxu0 0.0
        %1336 = vmatpush1.xpose.msra.mxu0 0.0
        %1337 = vmatprep.subr.mxu0 0.0
        %1338 = vmatpush1.xpose.msra.mxu0 0.0
        %1339 = vmatprep.subr.mxu0 0.0
        %1340 = vmatpush1.xpose.msra.mxu0 0.0
        %1341 = vmatprep.subr.mxu0 0.0
        %1342 = vmatpush1.xpose.msra.mxu0 0.0
        %1343 = vmatprep.mubr.f32.mxu0 0.0
        %1344 = vmatmul.mubr.f32.gmra.mrb[0].mxu0 %v1275
        %v1345 = vpop.f32.mrb[0].mxu0
        %v1346 = vadd.f32 %v794, %v1345
        %v1347 = vpop.f32.mrb[0].mxu0
        %1348 = vdwg.mxu0
        %v1349 = vsel %vm796, %v1346, -inf
        %1350 = vmax.xlane.f32.xlu0 %v1349
        %v1351 = vpop.xlane.xlu0 %1350
        %v1352 = vsub.f32 %v1346, %v1351
        %v1353 = vmul.f32 %v1352, 1.442695
        %v1354 = vpow.pop %v1353
        %v1355 = vsel %vm796, %v1354, 0.0
        %1356 = vadd.xlane.f32.xlu0 %v1355
        %v1357 = vpop.xlane.xlu0 %1356
        %v1358 = vrcp.pop %v1357
        %v1359 = vmul.f32 %v1354, %v1358
        %1360 = vrot.lane.b32.xlu0 %v784, 112
        %v1361 = vpop.permute.xlu0 %1360
        %v1364 = vsel %vm796, %v1359, 0
        %1366 = vmatprep.subr.mxu0 0.0
        %1367 = vmatpush1.msra.mxu0 %v1361
        %1368 = vmatprep.subr.mxu0 0.0
        %1369 = vmatpush1.msra.mxu0 0.0
        %1370 = vmatprep.subr.mxu0 0.0
        %1371 = vmatpush1.msra.mxu0 0.0
        %1372 = vmatprep.subr.mxu0 0.0
        %1373 = vmatpush1.msra.mxu0 0.0
        %1374 = vmatprep.subr.mxu0 0.0
        %1375 = vmatpush1.msra.mxu0 0.0
        %1376 = vmatprep.subr.mxu0 0.0
        %1377 = vmatpush1.msra.mxu0 0.0
        %1378 = vmatprep.subr.mxu0 0.0
        %1379 = vmatpush1.msra.mxu0 0.0
        %1380 = vmatprep.subr.mxu0 0.0
        %1381 = vmatpush1.msra.mxu0 0.0
        %1382 = vmatprep.subr.mxu0 0.0
        %1383 = vmatpush1.msra.mxu0 0.0
        %1384 = vmatprep.subr.mxu0 0.0
        %1385 = vmatpush1.msra.mxu0 0.0
        %1386 = vmatprep.subr.mxu0 0.0
        %1387 = vmatpush1.msra.mxu0 0.0
        %1388 = vmatprep.subr.mxu0 0.0
        %1389 = vmatpush1.msra.mxu0 0.0
        %1390 = vmatprep.subr.mxu0 0.0
        %1391 = vmatpush1.msra.mxu0 0.0
        %1392 = vmatprep.subr.mxu0 0.0
        %1393 = vmatpush1.msra.mxu0 0.0
        %1394 = vmatprep.subr.mxu0 0.0
        %1395 = vmatpush1.msra.mxu0 0.0
        %1396 = vmatprep.subr.mxu0 0.0
        %1397 = vmatpush1.msra.mxu0 0.0
        %1398 = vmatprep.subr.mxu0 0.0
        %1399 = vmatpush1.msra.mxu0 0.0
        %1400 = vmatprep.subr.mxu0 0.0
        %1401 = vmatpush1.msra.mxu0 0.0
        %1402 = vmatprep.subr.mxu0 0.0
        %1403 = vmatpush1.msra.mxu0 0.0
        %1404 = vmatprep.subr.mxu0 0.0
        %1405 = vmatpush1.msra.mxu0 0.0
        %1406 = vmatprep.subr.mxu0 0.0
        %1407 = vmatpush1.msra.mxu0 0.0
        %1408 = vmatprep.subr.mxu0 0.0
        %1409 = vmatpush1.msra.mxu0 0.0
        %1410 = vmatprep.subr.mxu0 0.0
        %1411 = vmatpush1.msra.mxu0 0.0
        %1412 = vmatprep.subr.mxu0 0.0
        %1413 = vmatpush1.msra.mxu0 0.0
        %1414 = vmatprep.subr.mxu0 0.0
        %1415 = vmatpush1.msra.mxu0 0.0
        %1416 = vmatprep.subr.mxu0 0.0
        %1417 = vmatpush1.msra.mxu0 0.0
        %1418 = vmatprep.subr.mxu0 0.0
        %1419 = vmatpush1.msra.mxu0 0.0
        %1420 = vmatprep.subr.mxu0 0.0
        %1421 = vmatpush1.msra.mxu0 0.0
        %1422 = vmatprep.subr.mxu0 0.0
        %1423 = vmatpush1.msra.mxu0 0.0
        %1424 = vmatprep.subr.mxu0 0.0
        %1425 = vmatpush1.msra.mxu0 0.0
        %1426 = vmatprep.subr.mxu0 0.0
        %1427 = vmatpush1.msra.mxu0 0.0
        %1428 = vmatprep.subr.mxu0 0.0
        %1429 = vmatpush1.msra.mxu0 0.0
        %1430 = vmatprep.mubr.f32.mxu0 0.0
        %1431 = vmatmul.mubr.f32.gmra.mrb[0].mxu0 %v1364
        %v1432 = vpop.f32.mrb[0].mxu0
        %v1433 = vadd.f32 0.0, %v1432
        %v1434 = vpop.f32.mrb[0].mxu0
        %1435 = vdwg.mxu0
        %v1436 = vld [vmem:[%s9 + $0x10] sm:$0xff]
        %v1438 = vsel %vm796, %v1433, 0
        %1440 = vmatprep.subr.mxu0 0.0
        %1441 = vmatpush1.msra.mxu0 %v1436
        %1442 = vmatprep.subr.mxu0 0.0
        %1443 = vmatpush1.msra.mxu0 0.0
        %1444 = vmatprep.subr.mxu0 0.0
        %1445 = vmatpush1.msra.mxu0 0.0
        %1446 = vmatprep.subr.mxu0 0.0
        %1447 = vmatpush1.msra.mxu0 0.0
        %1448 = vmatprep.subr.mxu0 0.0
        %1449 = vmatpush1.msra.mxu0 0.0
        %1450 = vmatprep.subr.mxu0 0.0
        %1451 = vmatpush1.msra.mxu0 0.0
        %1452 = vmatprep.subr.mxu0 0.0
        %1453 = vmatpush1.msra.mxu0 0.0
        %1454 = vmatprep.subr.mxu0 0.0
        %1455 = vmatpush1.msra.mxu0 0.0
        %1456 = vmatprep.subr.mxu0 0.0
        %1457 = vmatpush1.msra.mxu0 0.0
        %1458 = vmatprep.subr.mxu0 0.0
        %1459 = vmatpush1.msra.mxu0 0.0
        %1460 = vmatprep.subr.mxu0 0.0
        %1461 = vmatpush1.msra.mxu0 0.0
        %1462 = vmatprep.subr.mxu0 0.0
        %1463 = vmatpush1.msra.mxu0 0.0
        %1464 = vmatprep.subr.mxu0 0.0
        %1465 = vmatpush1.msra.mxu0 0.0
        %1466 = vmatprep.subr.mxu0 0.0
        %1467 = vmatpush1.msra.mxu0 0.0
        %1468 = vmatprep.subr.mxu0 0.0
        %1469 = vmatpush1.msra.mxu0 0.0
        %1470 = vmatprep.subr.mxu0 0.0
        %1471 = vmatpush1.msra.mxu0 0.0
        %1472 = vmatprep.subr.mxu0 0.0
        %1473 = vmatpush1.msra.mxu0 0.0
        %1474 = vmatprep.subr.mxu0 0.0
        %1475 = vmatpush1.msra.mxu0 0.0
        %1476 = vmatprep.subr.mxu0 0.0
        %1477 = vmatpush1.msra.mxu0 0.0
        %1478 = vmatprep.subr.mxu0 0.0
        %1479 = vmatpush1.msra.mxu0 0.0
        %1480 = vmatprep.subr.mxu0 0.0
        %1481 = vmatpush1.msra.mxu0 0.0
        %1482 = vmatprep.subr.mxu0 0.0
        %1483 = vmatpush1.msra.mxu0 0.0
        %1484 = vmatprep.subr.mxu0 0.0
        %1485 = vmatpush1.msra.mxu0 0.0
        %1486 = vmatprep.subr.mxu0 0.0
        %1487 = vmatpush1.msra.mxu0 0.0
        %1488 = vmatprep.subr.mxu0 0.0
        %1489 = vmatpush1.msra.mxu0 0.0
        %1490 = vmatprep.subr.mxu0 0.0
        %1491 = vmatpush1.msra.mxu0 0.0
        %1492 = vmatprep.subr.mxu0 0.0
        %1493 = vmatpush1.msra.mxu0 0.0
        %1494 = vmatprep.subr.mxu0 0.0
        %1495 = vmatpush1.msra.mxu0 0.0
        %1496 = vmatprep.subr.mxu0 0.0
        %1497 = vmatpush1.msra.mxu0 0.0
        %1498 = vmatprep.subr.mxu0 0.0
        %1499 = vmatpush1.msra.mxu0 0.0
        %1500 = vmatprep.subr.mxu0 0.0
        %1501 = vmatpush1.msra.mxu0 0.0
        %1502 = vmatprep.subr.mxu0 0.0
        %1503 = vmatpush1.msra.mxu0 0.0
        %1504 = vmatprep.mubr.f32.mxu0 0.0
        %1505 = vmatmul.mubr.f32.gmra.mrb[0].mxu0 %v1438
        %v1506 = vpop.f32.mrb[0].mxu0
        %v1507 = vadd.f32 0.0, %v1506
        %v1508 = vpop.f32.mrb[0].mxu0
        %1509 = vdwg.mxu0
        %v1510 = vadd.f32 %v1268, %v1507
        %1511 = vrot.lane.b32.xlu0 %v621, 104
        %v1512 = vpop.permute.xlu0 %1511
        %1513 = vrot.lane.b32.xlu0 %v703, 104
        %v1514 = vpop.permute.xlu0 %1513
        %v1515 = vsel %vm796, %v1512, 0
        %v1517 = vsel %vm796, %v1514, 0
        %1519 = vmatprep.subr.mxu0 0.0
        %1520 = vmatpush1.xpose.msra.mxu0 %v1517
        %1521 = vmatprep.subr.mxu0 0.0
        %1522 = vmatpush1.xpose.msra.mxu0 0.0
        %1523 = vmatprep.subr.mxu0 0.0
        %1524 = vmatpush1.xpose.msra.mxu0 0.0
        %1525 = vmatprep.subr.mxu0 0.0
        %1526 = vmatpush1.xpose.msra.mxu0 0.0
        %1527 = vmatprep.subr.mxu0 0.0
        %1528 = vmatpush1.xpose.msra.mxu0 0.0
        %1529 = vmatprep.subr.mxu0 0.0
        %1530 = vmatpush1.xpose.msra.mxu0 0.0
        %1531 = vmatprep.subr.mxu0 0.0
        %1532 = vmatpush1.xpose.msra.mxu0 0.0
        %1533 = vmatprep.subr.mxu0 0.0
        %1534 = vmatpush1.xpose.msra.mxu0 0.0
        %1535 = vmatprep.subr.mxu0 0.0
        %1536 = vmatpush1.xpose.msra.mxu0 0.0
        %1537 = vmatprep.subr.mxu0 0.0
        %1538 = vmatpush1.xpose.msra.mxu0 0.0
        %1539 = vmatprep.subr.mxu0 0.0
        %1540 = vmatpush1.xpose.msra.mxu0 0.0
        %1541 = vmatprep.subr.mxu0 0.0
        %1542 = vmatpush1.xpose.msra.mxu0 0.0
        %1543 = vmatprep.subr.mxu0 0.0
        %1544 = vmatpush1.xpose.msra.mxu0 0.0
        %1545 = vmatprep.subr.mxu0 0.0
        %1546 = vmatpush1.xpose.msra.mxu0 0.0
        %1547 = vmatprep.subr.mxu0 0.0
        %1548 = vmatpush1.xpose.msra.mxu0 0.0
        %1549 = vmatprep.subr.mxu0 0.0
        %1550 = vmatpush1.xpose.msra.mxu0 0.0
        %1551 = vmatprep.subr.mxu0 0.0
        %1552 = vmatpush1.xpose.msra.mxu0 0.0
        %1553 = vmatprep.subr.mxu0 0.0
        %1554 = vmatpush1.xpose.msra.mxu0 0.0
        %1555 = vmatprep.subr.mxu0 0.0
        %1556 = vmatpush1.xpose.msra.mxu0 0.0
        %1557 = vmatprep.subr.mxu0 0.0
        %1558 = vmatpush1.xpose.msra.mxu0 0.0
        %1559 = vmatprep.subr.mxu0 0.0
        %1560 = vmatpush1.xpose.msra.mxu0 0.0
        %1561 = vmatprep.subr.mxu0 0.0
        %1562 = vmatpush1.xpose.msra.mxu0 0.0
        %1563 = vmatprep.subr.mxu0 0.0
        %1564 = vmatpush1.xpose.msra.mxu0 0.0
        %1565 = vmatprep.subr.mxu0 0.0
        %1566 = vmatpush1.xpose.msra.mxu0 0.0
        %1567 = vmatprep.subr.mxu0 0.0
        %1568 = vmatpush1.xpose.msra.mxu0 0.0
        %1569 = vmatprep.subr.mxu0 0.0
        %1570 = vmatpush1.xpose.msra.mxu0 0.0
        %1571 = vmatprep.subr.mxu0 0.0
        %1572 = vmatpush1.xpose.msra.mxu0 0.0
        %1573 = vmatprep.subr.mxu0 0.0
        %1574 = vmatpush1.xpose.msra.mxu0 0.0
        %1575 = vmatprep.subr.mxu0 0.0
        %1576 = vmatpush1.xpose.msra.mxu0 0.0
        %1577 = vmatprep.subr.mxu0 0.0
        %1578 = vmatpush1.xpose.msra.mxu0 0.0
        %1579 = vmatprep.subr.mxu0 0.0
        %1580 = vmatpush1.xpose.msra.mxu0 0.0
        %1581 = vmatprep.subr.mxu0 0.0
        %1582 = vmatpush1.xpose.msra.mxu0 0.0
        %1583 = vmatprep.mubr.f32.mxu0 0.0
        %1584 = vmatmul.mubr.f32.gmra.mrb[0].mxu0 %v1515
        %v1585 = vpop.f32.mrb[0].mxu0
        %v1586 = vadd.f32 %v794, %v1585
        %v1587 = vpop.f32.mrb[0].mxu0
        %1588 = vdwg.mxu0
        %v1589 = vsel %vm796, %v1586, -inf
        %1590 = vmax.xlane.f32.xlu0 %v1589
        %v1591 = vpop.xlane.xlu0 %1590
        %v1592 = vsub.f32 %v1586, %v1591
        %v1593 = vmul.f32 %v1592, 1.442695
        %v1594 = vpow.pop %v1593
        %v1595 = vsel %vm796, %v1594, 0.0
        %1596 = vadd.xlane.f32.xlu0 %v1595
        %v1597 = vpop.xlane.xlu0 %1596
        %v1598 = vrcp.pop %v1597
        %v1599 = vmul.f32 %v1594, %v1598
        %1600 = vrot.lane.b32.xlu0 %v784, 104
        %v1601 = vpop.permute.xlu0 %1600
        %v1604 = vsel %vm796, %v1599, 0
        %1606 = vmatprep.subr.mxu0 0.0
        %1607 = vmatpush1.msra.mxu0 %v1601
        %1608 = vmatprep.subr.mxu0 0.0
        %1609 = vmatpush1.msra.mxu0 0.0
        %1610 = vmatprep.subr.mxu0 0.0
        %1611 = vmatpush1.msra.mxu0 0.0
        %1612 = vmatprep.subr.mxu0 0.0
        %1613 = vmatpush1.msra.mxu0 0.0
        %1614 = vmatprep.subr.mxu0 0.0
        %1615 = vmatpush1.msra.mxu0 0.0
        %1616 = vmatprep.subr.mxu0 0.0
        %1617 = vmatpush1.msra.mxu0 0.0
        %1618 = vmatprep.subr.mxu0 0.0
        %1619 = vmatpush1.msra.mxu0 0.0
        %1620 = vmatprep.subr.mxu0 0.0
        %1621 = vmatpush1.msra.mxu0 0.0
        %1622 = vmatprep.subr.mxu0 0.0
        %1623 = vmatpush1.msra.mxu0 0.0
        %1624 = vmatprep.subr.mxu0 0.0
        %1625 = vmatpush1.msra.mxu0 0.0
        %1626 = vmatprep.subr.mxu0 0.0
        %1627 = vmatpush1.msra.mxu0 0.0
        %1628 = vmatprep.subr.mxu0 0.0
        %1629 = vmatpush1.msra.mxu0 0.0
        %1630 = vmatprep.subr.mxu0 0.0
        %1631 = vmatpush1.msra.mxu0 0.0
        %1632 = vmatprep.subr.mxu0 0.0
        %1633 = vmatpush1.msra.mxu0 0.0
        %1634 = vmatprep.subr.mxu0 0.0
        %1635 = vmatpush1.msra.mxu0 0.0
        %1636 = vmatprep.subr.mxu0 0.0
        %1637 = vmatpush1.msra.mxu0 0.0
        %1638 = vmatprep.subr.mxu0 0.0
        %1639 = vmatpush1.msra.mxu0 0.0
        %1640 = vmatprep.subr.mxu0 0.0
        %1641 = vmatpush1.msra.mxu0 0.0
        %1642 = vmatprep.subr.mxu0 0.0
        %1643 = vmatpush1.msra.mxu0 0.0
        %1644 = vmatprep.subr.mxu0 0.0
        %1645 = vmatpush1.msra.mxu0 0.0
        %1646 = vmatprep.subr.mxu0 0.0
        %1647 = vmatpush1.msra.mxu0 0.0
        %1648 = vmatprep.subr.mxu0 0.0
        %1649 = vmatpush1.msra.mxu0 0.0
        %1650 = vmatprep.subr.mxu0 0.0
        %1651 = vmatpush1.msra.mxu0 0.0
        %1652 = vmatprep.subr.mxu0 0.0
        %1653 = vmatpush1.msra.mxu0 0.0
        %1654 = vmatprep.subr.mxu0 0.0
        %1655 = vmatpush1.msra.mxu0 0.0
        %1656 = vmatprep.subr.mxu0 0.0
        %1657 = vmatpush1.msra.mxu0 0.0
        %1658 = vmatprep.subr.mxu0 0.0
        %1659 = vmatpush1.msra.mxu0 0.0
        %1660 = vmatprep.subr.mxu0 0.0
        %1661 = vmatpush1.msra.mxu0 0.0
        %1662 = vmatprep.subr.mxu0 0.0
        %1663 = vmatpush1.msra.mxu0 0.0
        %1664 = vmatprep.subr.mxu0 0.0
        %1665 = vmatpush1.msra.mxu0 0.0
        %1666 = vmatprep.subr.mxu0 0.0
        %1667 = vmatpush1.msra.mxu0 0.0
        %1668 = vmatprep.subr.mxu0 0.0
        %1669 = vmatpush1.msra.mxu0 0.0
        %1670 = vmatprep.mubr.f32.mxu0 0.0
        %1671 = vmatmul.mubr.f32.gmra.mrb[0].mxu0 %v1604
        %v1672 = vpop.f32.mrb[0].mxu0
        %v1673 = vadd.f32 0.0, %v1672
        %v1674 = vpop.f32.mrb[0].mxu0
        %1675 = vdwg.mxu0
        %v1676 = vld [vmem:[%s9 + $0x18] sm:$0xff]
        %v1678 = vsel %vm796, %v1673, 0
        %1680 = vmatprep.subr.mxu0 0.0
        %1681 = vmatpush1.msra.mxu0 %v1676
        %1682 = vmatprep.subr.mxu0 0.0
        %1683 = vmatpush1.msra.mxu0 0.0
        %1684 = vmatprep.subr.mxu0 0.0
        %1685 = vmatpush1.msra.mxu0 0.0
        %1686 = vmatprep.subr.mxu0 0.0
        %1687 = vmatpush1.msra.mxu0 0.0
        %1688 = vmatprep.subr.mxu0 0.0
        %1689 = vmatpush1.msra.mxu0 0.0
        %1690 = vmatprep.subr.mxu0 0.0
        %1691 = vmatpush1.msra.mxu0 0.0
        %1692 = vmatprep.subr.mxu0 0.0
        %1693 = vmatpush1.msra.mxu0 0.0
        %1694 = vmatprep.subr.mxu0 0.0
        %1695 = vmatpush1.msra.mxu0 0.0
        %1696 = vmatprep.subr.mxu0 0.0
        %1697 = vmatpush1.msra.mxu0 0.0
        %1698 = vmatprep.subr.mxu0 0.0
        %1699 = vmatpush1.msra.mxu0 0.0
        %1700 = vmatprep.subr.mxu0 0.0
        %1701 = vmatpush1.msra.mxu0 0.0
        %1702 = vmatprep.subr.mxu0 0.0
        %1703 = vmatpush1.msra.mxu0 0.0
        %1704 = vmatprep.subr.mxu0 0.0
        %1705 = vmatpush1.msra.mxu0 0.0
        %1706 = vmatprep.subr.mxu0 0.0
        %1707 = vmatpush1.msra.mxu0 0.0
        %1708 = vmatprep.subr.mxu0 0.0
        %1709 = vmatpush1.msra.mxu0 0.0
        %1710 = vmatprep.subr.mxu0 0.0
        %1711 = vmatpush1.msra.mxu0 0.0
        %1712 = vmatprep.subr.mxu0 0.0
        %1713 = vmatpush1.msra.mxu0 0.0
        %1714 = vmatprep.subr.mxu0 0.0
        %1715 = vmatpush1.msra.mxu0 0.0
        %1716 = vmatprep.subr.mxu0 0.0
        %1717 = vmatpush1.msra.mxu0 0.0
        %1718 = vmatprep.subr.mxu0 0.0
        %1719 = vmatpush1.msra.mxu0 0.0
        %1720 = vmatprep.subr.mxu0 0.0
        %1721 = vmatpush1.msra.mxu0 0.0
        %1722 = vmatprep.subr.mxu0 0.0
        %1723 = vmatpush1.msra.mxu0 0.0
        %1724 = vmatprep.subr.mxu0 0.0
        %1725 = vmatpush1.msra.mxu0 0.0
        %1726 = vmatprep.subr.mxu0 0.0
        %1727 = vmatpush1.msra.mxu0 0.0
        %1728 = vmatprep.subr.mxu0 0.0
        %1729 = vmatpush1.msra.mxu0 0.0
        %1730 = vmatprep.subr.mxu0 0.0
        %1731 = vmatpush1.msra.mxu0 0.0
        %1732 = vmatprep.subr.mxu0 0.0
        %1733 = vmatpush1.msra.mxu0 0.0
        %1734 = vmatprep.subr.mxu0 0.0
        %1735 = vmatpush1.msra.mxu0 0.0
        %1736 = vmatprep.subr.mxu0 0.0
        %1737 = vmatpush1.msra.mxu0 0.0
        %1738 = vmatprep.subr.mxu0 0.0
        %1739 = vmatpush1.msra.mxu0 0.0
        %1740 = vmatprep.subr.mxu0 0.0
        %1741 = vmatpush1.msra.mxu0 0.0
        %1742 = vmatprep.subr.mxu0 0.0
        %1743 = vmatpush1.msra.mxu0 0.0
        %1744 = vmatprep.mubr.f32.mxu0 0.0
        %1745 = vmatmul.mubr.f32.gmra.mrb[0].mxu0 %v1678
        %v1746 = vpop.f32.mrb[0].mxu0
        %v1747 = vadd.f32 0.0, %v1746
        %v1748 = vpop.f32.mrb[0].mxu0
        %1749 = vdwg.mxu0
        %v1750 = vadd.f32 %v1510, %v1747
        %v1751 = vld [vmem:[%s10] sm:$0x1]
        %v1753 = vlaneseq
        %v1754 = vshrl.u32 %v1753, 7
        %v1755 = vsub.s32 0, %v1754
        %v1756 = vrot.slane %v1751, %v1755
        %v1758 = vadd.f32 %v1750, %v1756
        %1759 = vst.msk [vmem:[%s530] sm:$0xff] %vm547, %v1758
        %s1760 = sand.u32 %s288, 1
        %s1761 = scalar_lea.sflag [#allocation4], %s1760
        %s1762 = sand.u32 %s288, 1
        %s1763 = smul.addr %s1762, 8
        %s1764 = scalar_lea.vmem [#allocation16], %s1763
        // Predicated region
        $region97: #{tpu_custom_call.1} parent=63 // pred_check
          %p1765 = pneg %p298
        $region98: #{tpu_custom_call.1} parent=63 // pred_check_branch
          %1767 = sbr.rel (%p1765) target = $region100
        $region99: #{tpu_custom_call.1} parent=63 // pred_region
          %s1769 = ssub.s32 128, 128
          %1770 = vsyncadd %s1761, %s1769
          %s1771 = smul.addr %s34, 128
          %s1772 = scalar_lea.hbm %s11, %s1771
          %s1774 = sshll.u32 %s1764, 4
          %s1775 = int_to_ptr.vmem [resolvable:$true] %s1774
          %1777 = dma.vmem_to_hbm [thread:$0]  %s1775, 128, %s1772, %s1761
        $region100: #{tpu_custom_call.1} parent=63 // pred_fallthru
          _
      $region64: #{tpu_custom_call.1} parent=5 // pred_fallthru
        _
      %p1778 = scmp.le.s32.totalorder 2, %s29
      // Predicated region
      $region101: #{tpu_custom_call.1} parent=5 // pred_check
        %p1779 = pneg %p1778
      $region102: #{tpu_custom_call.1} parent=5 // pred_check_branch
        %1781 = sbr.rel (%p1779) target = $region104
      $region103: #{tpu_custom_call.1} parent=5 // pred_region
        %s1782 = ssub.s32 %s29, 2
        // Predicated region
        $region105: #{tpu_custom_call.1} parent=103 // pred_check
          %p1783 = pneg %p304
        $region106: #{tpu_custom_call.1} parent=103 // pred_check_branch
          %1785 = sbr.rel (%p1783) target = $region108
        $region107: #{tpu_custom_call.1} parent=103 // pred_region
          %s1786 = sand.u32 %s289, 1
          %s1787 = scalar_lea.sflag [#allocation4], %s1786
          %s1788 = sand.u32 %s289, 1
          %s1789 = smul.addr %s1788, 8
          %s1790 = scalar_lea.vmem [#allocation16], %s1789
          %1791 = dma.done %s1787, 128
        $region108: #{tpu_custom_call.1} parent=103 // pred_fallthru
          _
      $region104: #{tpu_custom_call.1} parent=5 // pred_fallthru
        _
    $region6: #{tpu_custom_call.1} parent=1 // loop_footer
      %s33 = sadd.s32 1, %s29
    $region7: #{tpu_custom_call.1} parent=1 // loop_footer_branch
      %28 = sbr.rel target = $region3
    $region8: #{tpu_custom_call.1} parent=1 // loop_exit
      _
    %1792 = vsyncpa [#allocation3], 1
    %s1793 = scalar_lea.sflag [#allocation3], 1
    %1794 = vsyncpa %s1793, 1
    %1795 = vsyncpa [#allocation6], 1
    %s1796 = scalar_lea.sflag [#allocation6], 1
    %1797 = vsyncpa %s1796, 1
    %1798 = vsyncpa [#allocation9], 1
    %1799 = vsyncpa [#allocation12], 1
    %1800 = vsyncpa [#allocation15], 1
    %1801 = vsyncpa [#allocation4], 1
    %s1802 = scalar_lea.sflag [#allocation4], 1
    %1803 = vsyncpa %s1802, 1

</llo_original>
